<compile_context>
chip_gen: v6e
topology: v6e:2x2x1
jax: 0.10.0
libtpu: 0.0.40
codegen_flags: <defaults>
</compile_context>

<pallas_src>
import jax
import jax.numpy as jnp
import numpy as np
from jax.experimental import pallas as pl
from jax.experimental.pallas import tpu as pltpu

# --- constants matching the norse defaults / overrides in SeqNet.__init__ ---
DT = 1e-3
LIF_TAU_SYN_INV = 50.0     # tau_syn_inv=50 override
LIF_TAU_MEM_INV = 100.0    # 1 / 1e-2
V_TH = 1.0                 # v_leak = v_reset = 0
LI_TAU_SYN_INV = 200.0     # LIParameters default 1 / 5e-3
LI_TAU_MEM_INV = 100.0
BN_EPS = 1e-5
OPAD = 128                 # lane-dense padded output width (>= 10)


def _lif_step(v, i, z_in):
    """norse lif_feed_forward_step (v_leak = v_reset = 0, 'super' fwd = heaviside)."""
    v_dec = v + (DT * LIF_TAU_MEM_INV) * (i - v)
    i_dec = i * (1.0 - DT * LIF_TAU_SYN_INV)
    spike = v_dec > V_TH
    v_new = jnp.where(spike, 0.0, v_dec)        # reset without an extra multiply
    i_new = i_dec + z_in
    return v_new, i_new, spike.astype(jnp.float32)


def _bn_train(z, gamma, beta):
    """BatchNorm1d in training mode: per-call batch statistics over axis 0."""
    m = jnp.mean(z, axis=0, keepdims=True)
    c = z - m
    var = jnp.mean(c * c, axis=0, keepdims=True)
    scale = jax.lax.rsqrt(var + BN_EPS) * gamma  # (1,H) row; rsqrt on EUP
    return c * scale + beta


@jax.jit
def seqnet_forward(x, params):
    T, B, F = x.shape
    H1 = params["w0"].shape[1]
    H2 = params["w1"].shape[1]
    O = params["wo"].shape[1]
    assert H1 == H2, "packed small-parameter block assumes equal hidden widths"

    # Wrapper-side layout prep (cheap XLA ops):
    #  * fold time into the sublane axis so every matmul is one big batched op,
    #  * pre-cast x + weights to bf16 (native MXU operands, f32 accumulation),
    #  * pad the LILinearCell weight to 128 output lanes (lane-dense stores),
    #  * pack the six tiny (1,H) parameter rows into one (8,H) block.
    x_flat = x.reshape(T * B, F).astype(jnp.bfloat16)
    w0 = params["w0"].astype(jnp.bfloat16)
    w1 = params["w1"].astype(jnp.bfloat16)
    wo = jnp.pad(params["wo"], ((0, 0), (0, OPAD - O))).astype(jnp.bfloat16)
    pp = jnp.concatenate(
        [params["b0"], params["g0"], params["be0"],
         params["b1"], params["g1"], params["be1"],
         jnp.zeros((2, H1), jnp.float32)], axis=0)        # (8, H1)

    def kernel(x_ref, w0_ref, w1_ref, wo_ref, p_ref, out_ref, a0_ref, a1_ref):
        p = p_ref[...]
        b0, g0, be0 = p[0:1, :], p[1:2, :], p[2:3, :]
        b1, g1, be1 = p[3:4, :], p[4:5, :], p[5:6, :]

        # ---- phase 1: fc0 for the whole sequence in ONE MXU matmul ----
        z0_all = jnp.dot(x_ref[...], w0_ref[...],
                         preferred_element_type=jnp.float32) + b0

        # ---- phase 2: lif0 recurrence + per-timestep bn0 (pure VPU/XLU) ----
        v0 = jnp.zeros((B, H1), jnp.float32)
        i0 = jnp.zeros((B, H1), jnp.float32)
        for t in range(T):  # T is small: fully unrolled
            v0, i0, spk = _lif_step(v0, i0, z0_all[t * B:(t + 1) * B, :])
            a0_ref[t * B:(t + 1) * B, :] = _bn_train(spk, g0, be0)

        # ---- phase 3: fc1 for the whole sequence in ONE MXU matmul ----
        z1_all = jnp.dot(a0_ref[...].astype(jnp.bfloat16), w1_ref[...],
                         preferred_element_type=jnp.float32) + b1

        # ---- phase 4: lif1 recurrence + per-timestep bn1 ----
        v1 = jnp.zeros((B, H2), jnp.float32)
        i1 = jnp.zeros((B, H2), jnp.float32)
        for t in range(T):
            v1, i1, spk = _lif_step(v1, i1, z1_all[t * B:(t + 1) * B, :])
            a1_ref[t * B:(t + 1) * B, :] = _bn_train(spk, g1, be1)

        # ---- phase 5: LILinearCell input currents in ONE MXU matmul ----
        # Padded wo columns are zero, so padded state columns stay exactly zero.
        zo_all = jnp.dot(a1_ref[...].astype(jnp.bfloat16), wo_ref[...],
                         preferred_element_type=jnp.float32)

        # ---- phase 6: LI recurrence + lane-dense (B, 128) unmasked stores ----
        vo = jnp.zeros((B, OPAD), jnp.float32)
        io = jnp.zeros((B, OPAD), jnp.float32)
        for t in range(T):
            i_jump = io + zo_all[t * B:(t + 1) * B, :]
            vo = vo + (DT * LI_TAU_MEM_INV) * (i_jump - vo)
            io = i_jump * (1.0 - DT * LI_TAU_SYN_INV)
            out_ref[t] = vo

    vmem = lambda: pl.BlockSpec(memory_space=pltpu.MemorySpace.VMEM)
    flops = 2 * T * B * (F * H1 + H1 * H2 + H2 * OPAD)
    bytes_accessed = (x_flat.size * 2 + w0.size * 2 + w1.size * 2 + wo.size * 2
                      + pp.size * 4 + T * B * OPAD * 4)
    out_padded = pl.pallas_call(
        kernel,
        out_shape=jax.ShapeDtypeStruct((T, B, OPAD), jnp.float32),
        in_specs=[vmem() for _ in range(5)],
        out_specs=vmem(),
        scratch_shapes=[pltpu.VMEM((T * B, H1), jnp.float32),
                        pltpu.VMEM((T * B, H2), jnp.float32)],
        cost_estimate=pl.CostEstimate(flops=flops,
                                      transcendentals=2 * T * H1,
                                      bytes_accessed=bytes_accessed),
    )(x_flat, w0, w1, wo, pp)

    return out_padded[:, :, :O]                   # (T, B, O) — slice only, no reshape


def seqnet_ref(x, p):
    """Pure-JAX reference with identical numerics (bf16 matmul operands, f32 accum)."""
    T, B, _ = x.shape
    H1 = p["w0"].shape[1]
    H2 = p["w1"].shape[1]
    O = p["wo"].shape[1]
    bf = jnp.bfloat16
    w0 = p["w0"].astype(bf)
    w1 = p["w1"].astype(bf)
    wo = p["wo"].astype(bf)
    v0 = jnp.zeros((B, H1)); i0 = jnp.zeros((B, H1))
    v1 = jnp.zeros((B, H2)); i1 = jnp.zeros((B, H2))
    vo = jnp.zeros((B, O)); io = jnp.zeros((B, O))
    outs = []
    for t in range(T):
        z = jnp.dot(x[t].astype(bf), w0, preferred_element_type=jnp.float32) + p["b0"]
        v0, i0, z = _lif_step(v0, i0, z)
        z = _bn_train(z, p["g0"], p["be0"])
        z = jnp.dot(z.astype(bf), w1, preferred_element_type=jnp.float32) + p["b1"]
        v1, i1, z = _lif_step(v1, i1, z)
        z = _bn_train(z, p["g1"], p["be1"])
        i_jump = io + jnp.dot(z.astype(bf), wo, preferred_element_type=jnp.float32)
        vo = vo + DT * LI_TAU_MEM_INV * (i_jump - vo)
        io = i_jump * (1.0 - DT * LI_TAU_SYN_INV)
        outs.append(vo)
    return jnp.stack(outs, axis=0)


def make_params(key, feat, h1, h2, out):
    ks = jax.random.split(key, 8)

    def linear(kw, kb, fan_in, fan_out):
        bound = 1.0 / float(np.sqrt(fan_in))
        w = jax.random.uniform(kw, (fan_in, fan_out), jnp.float32, -bound, bound)
        b = jax.random.uniform(kb, (1, fan_out), jnp.float32, -bound, bound)
        return w, b

    w0, b0 = linear(ks[0], ks[1], feat, h1)
    w1, b1 = linear(ks[2], ks[3], h1, h2)
    wo = jax.random.normal(ks[4], (h2, out), jnp.float32) / float(np.sqrt(h2))
    g0 = 1.0 + 0.1 * jax.random.normal(ks[5], (1, h1), jnp.float32)
    be0 = 0.1 * jax.random.normal(ks[6], (1, h1), jnp.float32)
    g1 = 1.0 + 0.1 * jax.random.normal(ks[7], (1, h2), jnp.float32)
    be1 = jnp.zeros((1, h2), jnp.float32)
    return dict(w0=w0, b0=b0, g0=g0, be0=be0,
                w1=w1, b1=b1, g1=g1, be1=be1, wo=wo)


if __name__ == "__main__":
    # Small shapes consistent with the module: feature dim is hardcoded to
    # 28*28 by `view(-1, 28*28)`; seq/batch/hidden kept small.
    SEQ, BATCH, FEAT, H1, H2, OUT = 6, 8, 28 * 28, 64, 64, 10

    key = jax.random.PRNGKey(0)
    k_x, k_p = jax.random.split(key)
    params = make_params(k_p, FEAT, H1, H2, OUT)
    # scale inputs so LIF neurons actually cross threshold and spike
    x = 20.0 * jax.random.normal(k_x, (SEQ, BATCH, FEAT), jnp.float32)

    voltages = jax.block_until_ready(seqnet_forward(x, params))
    assert voltages.shape == (SEQ, BATCH, OUT)
    assert bool(jnp.all(jnp.isfinite(voltages)))

    # Sanity check vs. pure-JAX reference with the same bf16-matmul numerics.
    # Tolerant comparison: MXU vs XLA accumulation order can differ slightly,
    # and a value landing exactly on the spike threshold can flip a binary
    # spike, so require 95% elementwise agreement.
    ref = np.asarray(jax.block_until_ready(seqnet_ref(x, params)))
    got = np.asarray(voltages)
    ok = np.abs(got - ref) <= (5e-2 + 5e-2 * np.abs(ref))
    if np.mean(ok) < 0.95:
        raise AssertionError(f"kernel/ref mismatch: only {np.mean(ok):.3f} elements agree")

    print("KERNEL_OK")
</pallas_src>

<mosaic_0001>
module attributes {stable_mosaic.version = 11 : i64} {
  func.func @kernel(%arg0: memref<48x784xbf16, #tpu.memory_space<vmem>>, %arg1: memref<784x64xbf16, #tpu.memory_space<vmem>>, %arg2: memref<64x64xbf16, #tpu.memory_space<vmem>>, %arg3: memref<64x128xbf16, #tpu.memory_space<vmem>>, %arg4: memref<8x64xf32, #tpu.memory_space<vmem>>, %arg5: memref<6x8x128xf32, #tpu.memory_space<vmem>>, %arg6: memref<48x64xf32, #tpu.memory_space<vmem>>, %arg7: memref<48x64xf32, #tpu.memory_space<vmem>>) attributes {dimension_semantics = [], scalar_prefetch = 0 : i64, scratch_operands = 2 : i64, tpu.core_type = #tpu.core_type<tc>} {
    %c0 = arith.constant 0 : index
    %c0_0 = arith.constant 0 : index
    %0 = vector.load %arg4[%c0, %c0_0] : memref<8x64xf32, #tpu.memory_space<vmem>>, vector<8x64xf32>
    %1 = vector.extract_strided_slice %0 {offsets = [0, 0], sizes = [1, 64], strides = [1, 1]} : vector<8x64xf32> to vector<1x64xf32>
    %2 = vector.extract_strided_slice %0 {offsets = [1, 0], sizes = [1, 64], strides = [1, 1]} : vector<8x64xf32> to vector<1x64xf32>
    %3 = vector.extract_strided_slice %0 {offsets = [2, 0], sizes = [1, 64], strides = [1, 1]} : vector<8x64xf32> to vector<1x64xf32>
    %4 = vector.extract_strided_slice %0 {offsets = [3, 0], sizes = [1, 64], strides = [1, 1]} : vector<8x64xf32> to vector<1x64xf32>
    %5 = vector.extract_strided_slice %0 {offsets = [4, 0], sizes = [1, 64], strides = [1, 1]} : vector<8x64xf32> to vector<1x64xf32>
    %6 = vector.extract_strided_slice %0 {offsets = [5, 0], sizes = [1, 64], strides = [1, 1]} : vector<8x64xf32> to vector<1x64xf32>
    %c0_1 = arith.constant 0 : index
    %c0_2 = arith.constant 0 : index
    %7 = vector.load %arg0[%c0_1, %c0_2] : memref<48x784xbf16, #tpu.memory_space<vmem>>, vector<48x784xbf16>
    %c0_3 = arith.constant 0 : index
    %c0_4 = arith.constant 0 : index
    %8 = vector.load %arg1[%c0_3, %c0_4] : memref<784x64xbf16, #tpu.memory_space<vmem>>, vector<784x64xbf16>
    %cst = arith.constant dense<0.000000e+00> : vector<48x64xf32>
    %9 = tpu.matmul %7, %8, %cst {dimension_numbers = #tpu.dot_dimension_numbers<[1], [0], [0], [1], [0, 0, 1, 1], [], []>} : vector<48x784xbf16>, vector<784x64xbf16>, vector<48x64xf32> -> vector<48x64xf32>
    %10 = vector.broadcast %1 : vector<1x64xf32> to vector<48x64xf32>
    %11 = arith.addf %9, %10 : vector<48x64xf32>
    %cst_5 = arith.constant 0.000000e+00 : f32
    %12 = vector.broadcast %cst_5 : f32 to vector<8x64xf32>
    %cst_6 = arith.constant 0.000000e+00 : f32
    %13 = vector.broadcast %cst_6 : f32 to vector<8x64xf32>
    %14 = vector.extract_strided_slice %11 {offsets = [0, 0], sizes = [8, 64], strides = [1, 1]} : vector<48x64xf32> to vector<8x64xf32>
    %15 = arith.subf %13, %12 : vector<8x64xf32>
    %cst_7 = arith.constant 1.000000e-01 : f32
    %16 = vector.broadcast %cst_7 : f32 to vector<8x64xf32>
    %17 = arith.mulf %16, %15 : vector<8x64xf32>
    %18 = arith.addf %12, %17 : vector<8x64xf32>
    %cst_8 = arith.constant 0.949999988 : f32
    %19 = vector.broadcast %cst_8 : f32 to vector<8x64xf32>
    %20 = arith.mulf %13, %19 : vector<8x64xf32>
    %cst_9 = arith.constant 1.000000e+00 : f32
    %21 = vector.broadcast %cst_9 : f32 to vector<8x64xf32>
    %22 = arith.cmpf ogt, %18, %21 : vector<8x64xf32>
    %cst_10 = arith.constant 0.000000e+00 : f32
    %23 = vector.broadcast %cst_10 : f32 to vector<8x64xf32>
    %24 = arith.select %22, %23, %18 : vector<8x64xi1>, vector<8x64xf32>
    %25 = arith.addf %20, %14 : vector<8x64xf32>
    %26 = arith.extui %22 : vector<8x64xi1> to vector<8x64xi32>
    %27 = arith.sitofp %26 : vector<8x64xi32> to vector<8x64xf32>
    %cst_11 = arith.constant dense<0.000000e+00> : vector<64xf32>
    %28 = vector.multi_reduction <add>, %27, %cst_11 [0] : vector<8x64xf32> to vector<64xf32>
    %29 = vector.shape_cast %28 : vector<64xf32> to vector<1x64xf32>
    %cst_12 = arith.constant 8.000000e+00 : f32
    %30 = vector.broadcast %cst_12 : f32 to vector<1x64xf32>
    %31 = arith.divf %29, %30 : vector<1x64xf32>
    %32 = vector.broadcast %31 : vector<1x64xf32> to vector<8x64xf32>
    %33 = arith.subf %27, %32 : vector<8x64xf32>
    %34 = arith.mulf %33, %33 : vector<8x64xf32>
    %cst_13 = arith.constant dense<0.000000e+00> : vector<64xf32>
    %35 = vector.multi_reduction <add>, %34, %cst_13 [0] : vector<8x64xf32> to vector<64xf32>
    %36 = vector.shape_cast %35 : vector<64xf32> to vector<1x64xf32>
    %cst_14 = arith.constant 8.000000e+00 : f32
    %37 = vector.broadcast %cst_14 : f32 to vector<1x64xf32>
    %38 = arith.divf %36, %37 : vector<1x64xf32>
    %cst_15 = arith.constant 9.99999974E-6 : f32
    %39 = vector.broadcast %cst_15 : f32 to vector<1x64xf32>
    %40 = arith.addf %38, %39 : vector<1x64xf32>
    %41 = math.rsqrt %40 : vector<1x64xf32>
    %42 = arith.mulf %41, %2 : vector<1x64xf32>
    %43 = vector.broadcast %42 : vector<1x64xf32> to vector<8x64xf32>
    %44 = arith.mulf %33, %43 : vector<8x64xf32>
    %45 = vector.broadcast %3 : vector<1x64xf32> to vector<8x64xf32>
    %46 = arith.addf %44, %45 : vector<8x64xf32>
    %c0_16 = arith.constant 0 : index
    %c0_17 = arith.constant 0 : index
    %47 = vector.load %arg6[%c0_16, %c0_17] : memref<48x64xf32, #tpu.memory_space<vmem>>, vector<8x64xf32>
    tpu.vector_store %arg6[%c0_16, %c0_17], %46 {strides = array<i32>} : memref<48x64xf32, #tpu.memory_space<vmem>>, vector<8x64xf32>,
    %48 = vector.extract_strided_slice %11 {offsets = [8, 0], sizes = [8, 64], strides = [1, 1]} : vector<48x64xf32> to vector<8x64xf32>
    %49 = arith.subf %25, %24 : vector<8x64xf32>
    %cst_18 = arith.constant 1.000000e-01 : f32
    %50 = vector.broadcast %cst_18 : f32 to vector<8x64xf32>
    %51 = arith.mulf %50, %49 : vector<8x64xf32>
    %52 = arith.addf %24, %51 : vector<8x64xf32>
    %cst_19 = arith.constant 0.949999988 : f32
    %53 = vector.broadcast %cst_19 : f32 to vector<8x64xf32>
    %54 = arith.mulf %25, %53 : vector<8x64xf32>
    %cst_20 = arith.constant 1.000000e+00 : f32
    %55 = vector.broadcast %cst_20 : f32 to vector<8x64xf32>
    %56 = arith.cmpf ogt, %52, %55 : vector<8x64xf32>
    %cst_21 = arith.constant 0.000000e+00 : f32
    %57 = vector.broadcast %cst_21 : f32 to vector<8x64xf32>
    %58 = arith.select %56, %57, %52 : vector<8x64xi1>, vector<8x64xf32>
    %59 = arith.addf %54, %48 : vector<8x64xf32>
    %60 = arith.extui %56 : vector<8x64xi1> to vector<8x64xi32>
    %61 = arith.sitofp %60 : vector<8x64xi32> to vector<8x64xf32>
    %cst_22 = arith.constant dense<0.000000e+00> : vector<64xf32>
    %62 = vector.multi_reduction <add>, %61, %cst_22 [0] : vector<8x64xf32> to vector<64xf32>
    %63 = vector.shape_cast %62 : vector<64xf32> to vector<1x64xf32>
    %cst_23 = arith.constant 8.000000e+00 : f32
    %64 = vector.broadcast %cst_23 : f32 to vector<1x64xf32>
    %65 = arith.divf %63, %64 : vector<1x64xf32>
    %66 = vector.broadcast %65 : vector<1x64xf32> to vector<8x64xf32>
    %67 = arith.subf %61, %66 : vector<8x64xf32>
    %68 = arith.mulf %67, %67 : vector<8x64xf32>
    %cst_24 = arith.constant dense<0.000000e+00> : vector<64xf32>
    %69 = vector.multi_reduction <add>, %68, %cst_24 [0] : vector<8x64xf32> to vector<64xf32>
    %70 = vector.shape_cast %69 : vector<64xf32> to vector<1x64xf32>
    %cst_25 = arith.constant 8.000000e+00 : f32
    %71 = vector.broadcast %cst_25 : f32 to vector<1x64xf32>
    %72 = arith.divf %70, %71 : vector<1x64xf32>
    %cst_26 = arith.constant 9.99999974E-6 : f32
    %73 = vector.broadcast %cst_26 : f32 to vector<1x64xf32>
    %74 = arith.addf %72, %73 : vector<1x64xf32>
    %75 = math.rsqrt %74 : vector<1x64xf32>
    %76 = arith.mulf %75, %2 : vector<1x64xf32>
    %77 = vector.broadcast %76 : vector<1x64xf32> to vector<8x64xf32>
    %78 = arith.mulf %67, %77 : vector<8x64xf32>
    %79 = vector.broadcast %3 : vector<1x64xf32> to vector<8x64xf32>
    %80 = arith.addf %78, %79 : vector<8x64xf32>
    %c8 = arith.constant 8 : index
    %c0_27 = arith.constant 0 : index
    %81 = vector.load %arg6[%c8, %c0_27] : memref<48x64xf32, #tpu.memory_space<vmem>>, vector<8x64xf32>
    tpu.vector_store %arg6[%c8, %c0_27], %80 {strides = array<i32>} : memref<48x64xf32, #tpu.memory_space<vmem>>, vector<8x64xf32>,
    %82 = vector.extract_strided_slice %11 {offsets = [16, 0], sizes = [8, 64], strides = [1, 1]} : vector<48x64xf32> to vector<8x64xf32>
    %83 = arith.subf %59, %58 : vector<8x64xf32>
    %cst_28 = arith.constant 1.000000e-01 : f32
    %84 = vector.broadcast %cst_28 : f32 to vector<8x64xf32>
    %85 = arith.mulf %84, %83 : vector<8x64xf32>
    %86 = arith.addf %58, %85 : vector<8x64xf32>
    %cst_29 = arith.constant 0.949999988 : f32
    %87 = vector.broadcast %cst_29 : f32 to vector<8x64xf32>
    %88 = arith.mulf %59, %87 : vector<8x64xf32>
    %cst_30 = arith.constant 1.000000e+00 : f32
    %89 = vector.broadcast %cst_30 : f32 to vector<8x64xf32>
    %90 = arith.cmpf ogt, %86, %89 : vector<8x64xf32>
    %cst_31 = arith.constant 0.000000e+00 : f32
    %91 = vector.broadcast %cst_31 : f32 to vector<8x64xf32>
    %92 = arith.select %90, %91, %86 : vector<8x64xi1>, vector<8x64xf32>
    %93 = arith.addf %88, %82 : vector<8x64xf32>
    %94 = arith.extui %90 : vector<8x64xi1> to vector<8x64xi32>
    %95 = arith.sitofp %94 : vector<8x64xi32> to vector<8x64xf32>
    %cst_32 = arith.constant dense<0.000000e+00> : vector<64xf32>
    %96 = vector.multi_reduction <add>, %95, %cst_32 [0] : vector<8x64xf32> to vector<64xf32>
    %97 = vector.shape_cast %96 : vector<64xf32> to vector<1x64xf32>
    %cst_33 = arith.constant 8.000000e+00 : f32
    %98 = vector.broadcast %cst_33 : f32 to vector<1x64xf32>
    %99 = arith.divf %97, %98 : vector<1x64xf32>
    %100 = vector.broadcast %99 : vector<1x64xf32> to vector<8x64xf32>
    %101 = arith.subf %95, %100 : vector<8x64xf32>
    %102 = arith.mulf %101, %101 : vector<8x64xf32>
    %cst_34 = arith.constant dense<0.000000e+00> : vector<64xf32>
    %103 = vector.multi_reduction <add>, %102, %cst_34 [0] : vector<8x64xf32> to vector<64xf32>
    %104 = vector.shape_cast %103 : vector<64xf32> to vector<1x64xf32>
    %cst_35 = arith.constant 8.000000e+00 : f32
    %105 = vector.broadcast %cst_35 : f32 to vector<1x64xf32>
    %106 = arith.divf %104, %105 : vector<1x64xf32>
    %cst_36 = arith.constant 9.99999974E-6 : f32
    %107 = vector.broadcast %cst_36 : f32 to vector<1x64xf32>
    %108 = arith.addf %106, %107 : vector<1x64xf32>
    %109 = math.rsqrt %108 : vector<1x64xf32>
    %110 = arith.mulf %109, %2 : vector<1x64xf32>
    %111 = vector.broadcast %110 : vector<1x64xf32> to vector<8x64xf32>
    %112 = arith.mulf %101, %111 : vector<8x64xf32>
    %113 = vector.broadcast %3 : vector<1x64xf32> to vector<8x64xf32>
    %114 = arith.addf %112, %113 : vector<8x64xf32>
    %c16 = arith.constant 16 : index
    %c0_37 = arith.constant 0 : index
    %115 = vector.load %arg6[%c16, %c0_37] : memref<48x64xf32, #tpu.memory_space<vmem>>, vector<8x64xf32>
    tpu.vector_store %arg6[%c16, %c0_37], %114 {strides = array<i32>} : memref<48x64xf32, #tpu.memory_space<vmem>>, vector<8x64xf32>,
    %116 = vector.extract_strided_slice %11 {offsets = [24, 0], sizes = [8, 64], strides = [1, 1]} : vector<48x64xf32> to vector<8x64xf32>
    %117 = arith.subf %93, %92 : vector<8x64xf32>
    %cst_38 = arith.constant 1.000000e-01 : f32
    %118 = vector.broadcast %cst_38 : f32 to vector<8x64xf32>
    %119 = arith.mulf %118, %117 : vector<8x64xf32>
    %120 = arith.addf %92, %119 : vector<8x64xf32>
    %cst_39 = arith.constant 0.949999988 : f32
    %121 = vector.broadcast %cst_39 : f32 to vector<8x64xf32>
    %122 = arith.mulf %93, %121 : vector<8x64xf32>
    %cst_40 = arith.constant 1.000000e+00 : f32
    %123 = vector.broadcast %cst_40 : f32 to vector<8x64xf32>
    %124 = arith.cmpf ogt, %120, %123 : vector<8x64xf32>
    %cst_41 = arith.constant 0.000000e+00 : f32
    %125 = vector.broadcast %cst_41 : f32 to vector<8x64xf32>
    %126 = arith.select %124, %125, %120 : vector<8x64xi1>, vector<8x64xf32>
    %127 = arith.addf %122, %116 : vector<8x64xf32>
    %128 = arith.extui %124 : vector<8x64xi1> to vector<8x64xi32>
    %129 = arith.sitofp %128 : vector<8x64xi32> to vector<8x64xf32>
    %cst_42 = arith.constant dense<0.000000e+00> : vector<64xf32>
    %130 = vector.multi_reduction <add>, %129, %cst_42 [0] : vector<8x64xf32> to vector<64xf32>
    %131 = vector.shape_cast %130 : vector<64xf32> to vector<1x64xf32>
    %cst_43 = arith.constant 8.000000e+00 : f32
    %132 = vector.broadcast %cst_43 : f32 to vector<1x64xf32>
    %133 = arith.divf %131, %132 : vector<1x64xf32>
    %134 = vector.broadcast %133 : vector<1x64xf32> to vector<8x64xf32>
    %135 = arith.subf %129, %134 : vector<8x64xf32>
    %136 = arith.mulf %135, %135 : vector<8x64xf32>
    %cst_44 = arith.constant dense<0.000000e+00> : vector<64xf32>
    %137 = vector.multi_reduction <add>, %136, %cst_44 [0] : vector<8x64xf32> to vector<64xf32>
    %138 = vector.shape_cast %137 : vector<64xf32> to vector<1x64xf32>
    %cst_45 = arith.constant 8.000000e+00 : f32
    %139 = vector.broadcast %cst_45 : f32 to vector<1x64xf32>
    %140 = arith.divf %138, %139 : vector<1x64xf32>
    %cst_46 = arith.constant 9.99999974E-6 : f32
    %141 = vector.broadcast %cst_46 : f32 to vector<1x64xf32>
    %142 = arith.addf %140, %141 : vector<1x64xf32>
    %143 = math.rsqrt %142 : vector<1x64xf32>
    %144 = arith.mulf %143, %2 : vector<1x64xf32>
    %145 = vector.broadcast %144 : vector<1x64xf32> to vector<8x64xf32>
    %146 = arith.mulf %135, %145 : vector<8x64xf32>
    %147 = vector.broadcast %3 : vector<1x64xf32> to vector<8x64xf32>
    %148 = arith.addf %146, %147 : vector<8x64xf32>
    %c24 = arith.constant 24 : index
    %c0_47 = arith.constant 0 : index
    %149 = vector.load %arg6[%c24, %c0_47] : memref<48x64xf32, #tpu.memory_space<vmem>>, vector<8x64xf32>
    tpu.vector_store %arg6[%c24, %c0_47], %148 {strides = array<i32>} : memref<48x64xf32, #tpu.memory_space<vmem>>, vector<8x64xf32>,
    %150 = vector.extract_strided_slice %11 {offsets = [32, 0], sizes = [8, 64], strides = [1, 1]} : vector<48x64xf32> to vector<8x64xf32>
    %151 = arith.subf %127, %126 : vector<8x64xf32>
    %cst_48 = arith.constant 1.000000e-01 : f32
    %152 = vector.broadcast %cst_48 : f32 to vector<8x64xf32>
    %153 = arith.mulf %152, %151 : vector<8x64xf32>
    %154 = arith.addf %126, %153 : vector<8x64xf32>
    %cst_49 = arith.constant 0.949999988 : f32
    %155 = vector.broadcast %cst_49 : f32 to vector<8x64xf32>
    %156 = arith.mulf %127, %155 : vector<8x64xf32>
    %cst_50 = arith.constant 1.000000e+00 : f32
    %157 = vector.broadcast %cst_50 : f32 to vector<8x64xf32>
    %158 = arith.cmpf ogt, %154, %157 : vector<8x64xf32>
    %cst_51 = arith.constant 0.000000e+00 : f32
    %159 = vector.broadcast %cst_51 : f32 to vector<8x64xf32>
    %160 = arith.select %158, %159, %154 : vector<8x64xi1>, vector<8x64xf32>
    %161 = arith.addf %156, %150 : vector<8x64xf32>
    %162 = arith.extui %158 : vector<8x64xi1> to vector<8x64xi32>
    %163 = arith.sitofp %162 : vector<8x64xi32> to vector<8x64xf32>
    %cst_52 = arith.constant dense<0.000000e+00> : vector<64xf32>
    %164 = vector.multi_reduction <add>, %163, %cst_52 [0] : vector<8x64xf32> to vector<64xf32>
    %165 = vector.shape_cast %164 : vector<64xf32> to vector<1x64xf32>
    %cst_53 = arith.constant 8.000000e+00 : f32
    %166 = vector.broadcast %cst_53 : f32 to vector<1x64xf32>
    %167 = arith.divf %165, %166 : vector<1x64xf32>
    %168 = vector.broadcast %167 : vector<1x64xf32> to vector<8x64xf32>
    %169 = arith.subf %163, %168 : vector<8x64xf32>
    %170 = arith.mulf %169, %169 : vector<8x64xf32>
    %cst_54 = arith.constant dense<0.000000e+00> : vector<64xf32>
    %171 = vector.multi_reduction <add>, %170, %cst_54 [0] : vector<8x64xf32> to vector<64xf32>
    %172 = vector.shape_cast %171 : vector<64xf32> to vector<1x64xf32>
    %cst_55 = arith.constant 8.000000e+00 : f32
    %173 = vector.broadcast %cst_55 : f32 to vector<1x64xf32>
    %174 = arith.divf %172, %173 : vector<1x64xf32>
    %cst_56 = arith.constant 9.99999974E-6 : f32
    %175 = vector.broadcast %cst_56 : f32 to vector<1x64xf32>
    %176 = arith.addf %174, %175 : vector<1x64xf32>
    %177 = math.rsqrt %176 : vector<1x64xf32>
    %178 = arith.mulf %177, %2 : vector<1x64xf32>
    %179 = vector.broadcast %178 : vector<1x64xf32> to vector<8x64xf32>
    %180 = arith.mulf %169, %179 : vector<8x64xf32>
    %181 = vector.broadcast %3 : vector<1x64xf32> to vector<8x64xf32>
    %182 = arith.addf %180, %181 : vector<8x64xf32>
    %c32 = arith.constant 32 : index
    %c0_57 = arith.constant 0 : index
    %183 = vector.load %arg6[%c32, %c0_57] : memref<48x64xf32, #tpu.memory_space<vmem>>, vector<8x64xf32>
    tpu.vector_store %arg6[%c32, %c0_57], %182 {strides = array<i32>} : memref<48x64xf32, #tpu.memory_space<vmem>>, vector<8x64xf32>,
    %184 = arith.subf %161, %160 : vector<8x64xf32>
    %cst_58 = arith.constant 1.000000e-01 : f32
    %185 = vector.broadcast %cst_58 : f32 to vector<8x64xf32>
    %186 = arith.mulf %185, %184 : vector<8x64xf32>
    %187 = arith.addf %160, %186 : vector<8x64xf32>
    %cst_59 = arith.constant 1.000000e+00 : f32
    %188 = vector.broadcast %cst_59 : f32 to vector<8x64xf32>
    %189 = arith.cmpf ogt, %187, %188 : vector<8x64xf32>
    %190 = arith.extui %189 : vector<8x64xi1> to vector<8x64xi32>
    %191 = arith.sitofp %190 : vector<8x64xi32> to vector<8x64xf32>
    %cst_60 = arith.constant dense<0.000000e+00> : vector<64xf32>
    %192 = vector.multi_reduction <add>, %191, %cst_60 [0] : vector<8x64xf32> to vector<64xf32>
    %193 = vector.shape_cast %192 : vector<64xf32> to vector<1x64xf32>
    %cst_61 = arith.constant 8.000000e+00 : f32
    %194 = vector.broadcast %cst_61 : f32 to vector<1x64xf32>
    %195 = arith.divf %193, %194 : vector<1x64xf32>
    %196 = vector.broadcast %195 : vector<1x64xf32> to vector<8x64xf32>
    %197 = arith.subf %191, %196 : vector<8x64xf32>
    %198 = arith.mulf %197, %197 : vector<8x64xf32>
    %cst_62 = arith.constant dense<0.000000e+00> : vector<64xf32>
    %199 = vector.multi_reduction <add>, %198, %cst_62 [0] : vector<8x64xf32> to vector<64xf32>
    %200 = vector.shape_cast %199 : vector<64xf32> to vector<1x64xf32>
    %cst_63 = arith.constant 8.000000e+00 : f32
    %201 = vector.broadcast %cst_63 : f32 to vector<1x64xf32>
    %202 = arith.divf %200, %201 : vector<1x64xf32>
    %cst_64 = arith.constant 9.99999974E-6 : f32
    %203 = vector.broadcast %cst_64 : f32 to vector<1x64xf32>
    %204 = arith.addf %202, %203 : vector<1x64xf32>
    %205 = math.rsqrt %204 : vector<1x64xf32>
    %206 = arith.mulf %205, %2 : vector<1x64xf32>
    %207 = vector.broadcast %206 : vector<1x64xf32> to vector<8x64xf32>
    %208 = arith.mulf %197, %207 : vector<8x64xf32>
    %209 = vector.broadcast %3 : vector<1x64xf32> to vector<8x64xf32>
    %210 = arith.addf %208, %209 : vector<8x64xf32>
    %c40 = arith.constant 40 : index
    %c0_65 = arith.constant 0 : index
    %211 = vector.load %arg6[%c40, %c0_65] : memref<48x64xf32, #tpu.memory_space<vmem>>, vector<8x64xf32>
    tpu.vector_store %arg6[%c40, %c0_65], %210 {strides = array<i32>} : memref<48x64xf32, #tpu.memory_space<vmem>>, vector<8x64xf32>,
    %c0_66 = arith.constant 0 : index
    %c0_67 = arith.constant 0 : index
    %212 = vector.load %arg6[%c0_66, %c0_67] : memref<48x64xf32, #tpu.memory_space<vmem>>, vector<48x64xf32>
    %213 = arith.truncf %212 : vector<48x64xf32> to vector<48x64xbf16>
    %c0_68 = arith.constant 0 : index
    %c0_69 = arith.constant 0 : index
    %214 = vector.load %arg2[%c0_68, %c0_69] : memref<64x64xbf16, #tpu.memory_space<vmem>>, vector<64x64xbf16>
    %cst_70 = arith.constant dense<0.000000e+00> : vector<48x64xf32>
    %215 = tpu.matmul %213, %214, %cst_70 {dimension_numbers = #tpu.dot_dimension_numbers<[1], [0], [0], [1], [0, 0, 1, 1], [], []>} : vector<48x64xbf16>, vector<64x64xbf16>, vector<48x64xf32> -> vector<48x64xf32>
    %216 = vector.broadcast %4 : vector<1x64xf32> to vector<48x64xf32>
    %217 = arith.addf %215, %216 : vector<48x64xf32>
    %cst_71 = arith.constant 0.000000e+00 : f32
    %218 = vector.broadcast %cst_71 : f32 to vector<8x64xf32>
    %cst_72 = arith.constant 0.000000e+00 : f32
    %219 = vector.broadcast %cst_72 : f32 to vector<8x64xf32>
    %220 = vector.extract_strided_slice %217 {offsets = [0, 0], sizes = [8, 64], strides = [1, 1]} : vector<48x64xf32> to vector<8x64xf32>
    %221 = arith.subf %219, %218 : vector<8x64xf32>
    %cst_73 = arith.constant 1.000000e-01 : f32
    %222 = vector.broadcast %cst_73 : f32 to vector<8x64xf32>
    %223 = arith.mulf %222, %221 : vector<8x64xf32>
    %224 = arith.addf %218, %223 : vector<8x64xf32>
    %cst_74 = arith.constant 0.949999988 : f32
    %225 = vector.broadcast %cst_74 : f32 to vector<8x64xf32>
    %226 = arith.mulf %219, %225 : vector<8x64xf32>
    %cst_75 = arith.constant 1.000000e+00 : f32
    %227 = vector.broadcast %cst_75 : f32 to vector<8x64xf32>
    %228 = arith.cmpf ogt, %224, %227 : vector<8x64xf32>
    %cst_76 = arith.constant 0.000000e+00 : f32
    %229 = vector.broadcast %cst_76 : f32 to vector<8x64xf32>
    %230 = arith.select %228, %229, %224 : vector<8x64xi1>, vector<8x64xf32>
    %231 = arith.addf %226, %220 : vector<8x64xf32>
    %232 = arith.extui %228 : vector<8x64xi1> to vector<8x64xi32>
    %233 = arith.sitofp %232 : vector<8x64xi32> to vector<8x64xf32>
    %cst_77 = arith.constant dense<0.000000e+00> : vector<64xf32>
    %234 = vector.multi_reduction <add>, %233, %cst_77 [0] : vector<8x64xf32> to vector<64xf32>
    %235 = vector.shape_cast %234 : vector<64xf32> to vector<1x64xf32>
    %cst_78 = arith.constant 8.000000e+00 : f32
    %236 = vector.broadcast %cst_78 : f32 to vector<1x64xf32>
    %237 = arith.divf %235, %236 : vector<1x64xf32>
    %238 = vector.broadcast %237 : vector<1x64xf32> to vector<8x64xf32>
    %239 = arith.subf %233, %238 : vector<8x64xf32>
    %240 = arith.mulf %239, %239 : vector<8x64xf32>
    %cst_79 = arith.constant dense<0.000000e+00> : vector<64xf32>
    %241 = vector.multi_reduction <add>, %240, %cst_79 [0] : vector<8x64xf32> to vector<64xf32>
    %242 = vector.shape_cast %241 : vector<64xf32> to vector<1x64xf32>
    %cst_80 = arith.constant 8.000000e+00 : f32
    %243 = vector.broadcast %cst_80 : f32 to vector<1x64xf32>
    %244 = arith.divf %242, %243 : vector<1x64xf32>
    %cst_81 = arith.constant 9.99999974E-6 : f32
    %245 = vector.broadcast %cst_81 : f32 to vector<1x64xf32>
    %246 = arith.addf %244, %245 : vector<1x64xf32>
    %247 = math.rsqrt %246 : vector<1x64xf32>
    %248 = arith.mulf %247, %5 : vector<1x64xf32>
    %249 = vector.broadcast %248 : vector<1x64xf32> to vector<8x64xf32>
    %250 = arith.mulf %239, %249 : vector<8x64xf32>
    %251 = vector.broadcast %6 : vector<1x64xf32> to vector<8x64xf32>
    %252 = arith.addf %250, %251 : vector<8x64xf32>
    %c0_82 = arith.constant 0 : index
    %c0_83 = arith.constant 0 : index
    %253 = vector.load %arg7[%c0_82, %c0_83] : memref<48x64xf32, #tpu.memory_space<vmem>>, vector<8x64xf32>
    tpu.vector_store %arg7[%c0_82, %c0_83], %252 {strides = array<i32>} : memref<48x64xf32, #tpu.memory_space<vmem>>, vector<8x64xf32>,
    %254 = vector.extract_strided_slice %217 {offsets = [8, 0], sizes = [8, 64], strides = [1, 1]} : vector<48x64xf32> to vector<8x64xf32>
    %255 = arith.subf %231, %230 : vector<8x64xf32>
    %cst_84 = arith.constant 1.000000e-01 : f32
    %256 = vector.broadcast %cst_84 : f32 to vector<8x64xf32>
    %257 = arith.mulf %256, %255 : vector<8x64xf32>
    %258 = arith.addf %230, %257 : vector<8x64xf32>
    %cst_85 = arith.constant 0.949999988 : f32
    %259 = vector.broadcast %cst_85 : f32 to vector<8x64xf32>
    %260 = arith.mulf %231, %259 : vector<8x64xf32>
    %cst_86 = arith.constant 1.000000e+00 : f32
    %261 = vector.broadcast %cst_86 : f32 to vector<8x64xf32>
    %262 = arith.cmpf ogt, %258, %261 : vector<8x64xf32>
    %cst_87 = arith.constant 0.000000e+00 : f32
    %263 = vector.broadcast %cst_87 : f32 to vector<8x64xf32>
    %264 = arith.select %262, %263, %258 : vector<8x64xi1>, vector<8x64xf32>
    %265 = arith.addf %260, %254 : vector<8x64xf32>
    %266 = arith.extui %262 : vector<8x64xi1> to vector<8x64xi32>
    %267 = arith.sitofp %266 : vector<8x64xi32> to vector<8x64xf32>
    %cst_88 = arith.constant dense<0.000000e+00> : vector<64xf32>
    %268 = vector.multi_reduction <add>, %267, %cst_88 [0] : vector<8x64xf32> to vector<64xf32>
    %269 = vector.shape_cast %268 : vector<64xf32> to vector<1x64xf32>
    %cst_89 = arith.constant 8.000000e+00 : f32
    %270 = vector.broadcast %cst_89 : f32 to vector<1x64xf32>
    %271 = arith.divf %269, %270 : vector<1x64xf32>
    %272 = vector.broadcast %271 : vector<1x64xf32> to vector<8x64xf32>
    %273 = arith.subf %267, %272 : vector<8x64xf32>
    %274 = arith.mulf %273, %273 : vector<8x64xf32>
    %cst_90 = arith.constant dense<0.000000e+00> : vector<64xf32>
    %275 = vector.multi_reduction <add>, %274, %cst_90 [0] : vector<8x64xf32> to vector<64xf32>
    %276 = vector.shape_cast %275 : vector<64xf32> to vector<1x64xf32>
    %cst_91 = arith.constant 8.000000e+00 : f32
    %277 = vector.broadcast %cst_91 : f32 to vector<1x64xf32>
    %278 = arith.divf %276, %277 : vector<1x64xf32>
    %cst_92 = arith.constant 9.99999974E-6 : f32
    %279 = vector.broadcast %cst_92 : f32 to vector<1x64xf32>
    %280 = arith.addf %278, %279 : vector<1x64xf32>
    %281 = math.rsqrt %280 : vector<1x64xf32>
    %282 = arith.mulf %281, %5 : vector<1x64xf32>
    %283 = vector.broadcast %282 : vector<1x64xf32> to vector<8x64xf32>
    %284 = arith.mulf %273, %283 : vector<8x64xf32>
    %285 = vector.broadcast %6 : vector<1x64xf32> to vector<8x64xf32>
    %286 = arith.addf %284, %285 : vector<8x64xf32>
    %c8_93 = arith.constant 8 : index
    %c0_94 = arith.constant 0 : index
    %287 = vector.load %arg7[%c8_93, %c0_94] : memref<48x64xf32, #tpu.memory_space<vmem>>, vector<8x64xf32>
    tpu.vector_store %arg7[%c8_93, %c0_94], %286 {strides = array<i32>} : memref<48x64xf32, #tpu.memory_space<vmem>>, vector<8x64xf32>,
    %288 = vector.extract_strided_slice %217 {offsets = [16, 0], sizes = [8, 64], strides = [1, 1]} : vector<48x64xf32> to vector<8x64xf32>
    %289 = arith.subf %265, %264 : vector<8x64xf32>
    %cst_95 = arith.constant 1.000000e-01 : f32
    %290 = vector.broadcast %cst_95 : f32 to vector<8x64xf32>
    %291 = arith.mulf %290, %289 : vector<8x64xf32>
    %292 = arith.addf %264, %291 : vector<8x64xf32>
    %cst_96 = arith.constant 0.949999988 : f32
    %293 = vector.broadcast %cst_96 : f32 to vector<8x64xf32>
    %294 = arith.mulf %265, %293 : vector<8x64xf32>
    %cst_97 = arith.constant 1.000000e+00 : f32
    %295 = vector.broadcast %cst_97 : f32 to vector<8x64xf32>
    %296 = arith.cmpf ogt, %292, %295 : vector<8x64xf32>
    %cst_98 = arith.constant 0.000000e+00 : f32
    %297 = vector.broadcast %cst_98 : f32 to vector<8x64xf32>
    %298 = arith.select %296, %297, %292 : vector<8x64xi1>, vector<8x64xf32>
    %299 = arith.addf %294, %288 : vector<8x64xf32>
    %300 = arith.extui %296 : vector<8x64xi1> to vector<8x64xi32>
    %301 = arith.sitofp %300 : vector<8x64xi32> to vector<8x64xf32>
    %cst_99 = arith.constant dense<0.000000e+00> : vector<64xf32>
    %302 = vector.multi_reduction <add>, %301, %cst_99 [0] : vector<8x64xf32> to vector<64xf32>
    %303 = vector.shape_cast %302 : vector<64xf32> to vector<1x64xf32>
    %cst_100 = arith.constant 8.000000e+00 : f32
    %304 = vector.broadcast %cst_100 : f32 to vector<1x64xf32>
    %305 = arith.divf %303, %304 : vector<1x64xf32>
    %306 = vector.broadcast %305 : vector<1x64xf32> to vector<8x64xf32>
    %307 = arith.subf %301, %306 : vector<8x64xf32>
    %308 = arith.mulf %307, %307 : vector<8x64xf32>
    %cst_101 = arith.constant dense<0.000000e+00> : vector<64xf32>
    %309 = vector.multi_reduction <add>, %308, %cst_101 [0] : vector<8x64xf32> to vector<64xf32>
    %310 = vector.shape_cast %309 : vector<64xf32> to vector<1x64xf32>
    %cst_102 = arith.constant 8.000000e+00 : f32
    %311 = vector.broadcast %cst_102 : f32 to vector<1x64xf32>
    %312 = arith.divf %310, %311 : vector<1x64xf32>
    %cst_103 = arith.constant 9.99999974E-6 : f32
    %313 = vector.broadcast %cst_103 : f32 to vector<1x64xf32>
    %314 = arith.addf %312, %313 : vector<1x64xf32>
    %315 = math.rsqrt %314 : vector<1x64xf32>
    %316 = arith.mulf %315, %5 : vector<1x64xf32>
    %317 = vector.broadcast %316 : vector<1x64xf32> to vector<8x64xf32>
    %318 = arith.mulf %307, %317 : vector<8x64xf32>
    %319 = vector.broadcast %6 : vector<1x64xf32> to vector<8x64xf32>
    %320 = arith.addf %318, %319 : vector<8x64xf32>
    %c16_104 = arith.constant 16 : index
    %c0_105 = arith.constant 0 : index
    %321 = vector.load %arg7[%c16_104, %c0_105] : memref<48x64xf32, #tpu.memory_space<vmem>>, vector<8x64xf32>
    tpu.vector_store %arg7[%c16_104, %c0_105], %320 {strides = array<i32>} : memref<48x64xf32, #tpu.memory_space<vmem>>, vector<8x64xf32>,
    %322 = vector.extract_strided_slice %217 {offsets = [24, 0], sizes = [8, 64], strides = [1, 1]} : vector<48x64xf32> to vector<8x64xf32>
    %323 = arith.subf %299, %298 : vector<8x64xf32>
    %cst_106 = arith.constant 1.000000e-01 : f32
    %324 = vector.broadcast %cst_106 : f32 to vector<8x64xf32>
    %325 = arith.mulf %324, %323 : vector<8x64xf32>
    %326 = arith.addf %298, %325 : vector<8x64xf32>
    %cst_107 = arith.constant 0.949999988 : f32
    %327 = vector.broadcast %cst_107 : f32 to vector<8x64xf32>
    %328 = arith.mulf %299, %327 : vector<8x64xf32>
    %cst_108 = arith.constant 1.000000e+00 : f32
    %329 = vector.broadcast %cst_108 : f32 to vector<8x64xf32>
    %330 = arith.cmpf ogt, %326, %329 : vector<8x64xf32>
    %cst_109 = arith.constant 0.000000e+00 : f32
    %331 = vector.broadcast %cst_109 : f32 to vector<8x64xf32>
    %332 = arith.select %330, %331, %326 : vector<8x64xi1>, vector<8x64xf32>
    %333 = arith.addf %328, %322 : vector<8x64xf32>
    %334 = arith.extui %330 : vector<8x64xi1> to vector<8x64xi32>
    %335 = arith.sitofp %334 : vector<8x64xi32> to vector<8x64xf32>
    %cst_110 = arith.constant dense<0.000000e+00> : vector<64xf32>
    %336 = vector.multi_reduction <add>, %335, %cst_110 [0] : vector<8x64xf32> to vector<64xf32>
    %337 = vector.shape_cast %336 : vector<64xf32> to vector<1x64xf32>
    %cst_111 = arith.constant 8.000000e+00 : f32
    %338 = vector.broadcast %cst_111 : f32 to vector<1x64xf32>
    %339 = arith.divf %337, %338 : vector<1x64xf32>
    %340 = vector.broadcast %339 : vector<1x64xf32> to vector<8x64xf32>
    %341 = arith.subf %335, %340 : vector<8x64xf32>
    %342 = arith.mulf %341, %341 : vector<8x64xf32>
    %cst_112 = arith.constant dense<0.000000e+00> : vector<64xf32>
    %343 = vector.multi_reduction <add>, %342, %cst_112 [0] : vector<8x64xf32> to vector<64xf32>
    %344 = vector.shape_cast %343 : vector<64xf32> to vector<1x64xf32>
    %cst_113 = arith.constant 8.000000e+00 : f32
    %345 = vector.broadcast %cst_113 : f32 to vector<1x64xf32>
    %346 = arith.divf %344, %345 : vector<1x64xf32>
    %cst_114 = arith.constant 9.99999974E-6 : f32
    %347 = vector.broadcast %cst_114 : f32 to vector<1x64xf32>
    %348 = arith.addf %346, %347 : vector<1x64xf32>
    %349 = math.rsqrt %348 : vector<1x64xf32>
    %350 = arith.mulf %349, %5 : vector<1x64xf32>
    %351 = vector.broadcast %350 : vector<1x64xf32> to vector<8x64xf32>
    %352 = arith.mulf %341, %351 : vector<8x64xf32>
    %353 = vector.broadcast %6 : vector<1x64xf32> to vector<8x64xf32>
    %354 = arith.addf %352, %353 : vector<8x64xf32>
    %c24_115 = arith.constant 24 : index
    %c0_116 = arith.constant 0 : index
    %355 = vector.load %arg7[%c24_115, %c0_116] : memref<48x64xf32, #tpu.memory_space<vmem>>, vector<8x64xf32>
    tpu.vector_store %arg7[%c24_115, %c0_116], %354 {strides = array<i32>} : memref<48x64xf32, #tpu.memory_space<vmem>>, vector<8x64xf32>,
    %356 = vector.extract_strided_slice %217 {offsets = [32, 0], sizes = [8, 64], strides = [1, 1]} : vector<48x64xf32> to vector<8x64xf32>
    %357 = arith.subf %333, %332 : vector<8x64xf32>
    %cst_117 = arith.constant 1.000000e-01 : f32
    %358 = vector.broadcast %cst_117 : f32 to vector<8x64xf32>
    %359 = arith.mulf %358, %357 : vector<8x64xf32>
    %360 = arith.addf %332, %359 : vector<8x64xf32>
    %cst_118 = arith.constant 0.949999988 : f32
    %361 = vector.broadcast %cst_118 : f32 to vector<8x64xf32>
    %362 = arith.mulf %333, %361 : vector<8x64xf32>
    %cst_119 = arith.constant 1.000000e+00 : f32
    %363 = vector.broadcast %cst_119 : f32 to vector<8x64xf32>
    %364 = arith.cmpf ogt, %360, %363 : vector<8x64xf32>
    %cst_120 = arith.constant 0.000000e+00 : f32
    %365 = vector.broadcast %cst_120 : f32 to vector<8x64xf32>
    %366 = arith.select %364, %365, %360 : vector<8x64xi1>, vector<8x64xf32>
    %367 = arith.addf %362, %356 : vector<8x64xf32>
    %368 = arith.extui %364 : vector<8x64xi1> to vector<8x64xi32>
    %369 = arith.sitofp %368 : vector<8x64xi32> to vector<8x64xf32>
    %cst_121 = arith.constant dense<0.000000e+00> : vector<64xf32>
    %370 = vector.multi_reduction <add>, %369, %cst_121 [0] : vector<8x64xf32> to vector<64xf32>
    %371 = vector.shape_cast %370 : vector<64xf32> to vector<1x64xf32>
    %cst_122 = arith.constant 8.000000e+00 : f32
    %372 = vector.broadcast %cst_122 : f32 to vector<1x64xf32>
    %373 = arith.divf %371, %372 : vector<1x64xf32>
    %374 = vector.broadcast %373 : vector<1x64xf32> to vector<8x64xf32>
    %375 = arith.subf %369, %374 : vector<8x64xf32>
    %376 = arith.mulf %375, %375 : vector<8x64xf32>
    %cst_123 = arith.constant dense<0.000000e+00> : vector<64xf32>
    %377 = vector.multi_reduction <add>, %376, %cst_123 [0] : vector<8x64xf32> to vector<64xf32>
    %378 = vector.shape_cast %377 : vector<64xf32> to vector<1x64xf32>
    %cst_124 = arith.constant 8.000000e+00 : f32
    %379 = vector.broadcast %cst_124 : f32 to vector<1x64xf32>
    %380 = arith.divf %378, %379 : vector<1x64xf32>
    %cst_125 = arith.constant 9.99999974E-6 : f32
    %381 = vector.broadcast %cst_125 : f32 to vector<1x64xf32>
    %382 = arith.addf %380, %381 : vector<1x64xf32>
    %383 = math.rsqrt %382 : vector<1x64xf32>
    %384 = arith.mulf %383, %5 : vector<1x64xf32>
    %385 = vector.broadcast %384 : vector<1x64xf32> to vector<8x64xf32>
    %386 = arith.mulf %375, %385 : vector<8x64xf32>
    %387 = vector.broadcast %6 : vector<1x64xf32> to vector<8x64xf32>
    %388 = arith.addf %386, %387 : vector<8x64xf32>
    %c32_126 = arith.constant 32 : index
    %c0_127 = arith.constant 0 : index
    %389 = vector.load %arg7[%c32_126, %c0_127] : memref<48x64xf32, #tpu.memory_space<vmem>>, vector<8x64xf32>
    tpu.vector_store %arg7[%c32_126, %c0_127], %388 {strides = array<i32>} : memref<48x64xf32, #tpu.memory_space<vmem>>, vector<8x64xf32>,
    %390 = arith.subf %367, %366 : vector<8x64xf32>
    %cst_128 = arith.constant 1.000000e-01 : f32
    %391 = vector.broadcast %cst_128 : f32 to vector<8x64xf32>
    %392 = arith.mulf %391, %390 : vector<8x64xf32>
    %393 = arith.addf %366, %392 : vector<8x64xf32>
    %cst_129 = arith.constant 1.000000e+00 : f32
    %394 = vector.broadcast %cst_129 : f32 to vector<8x64xf32>
    %395 = arith.cmpf ogt, %393, %394 : vector<8x64xf32>
    %396 = arith.extui %395 : vector<8x64xi1> to vector<8x64xi32>
    %397 = arith.sitofp %396 : vector<8x64xi32> to vector<8x64xf32>
    %cst_130 = arith.constant dense<0.000000e+00> : vector<64xf32>
    %398 = vector.multi_reduction <add>, %397, %cst_130 [0] : vector<8x64xf32> to vector<64xf32>
    %399 = vector.shape_cast %398 : vector<64xf32> to vector<1x64xf32>
    %cst_131 = arith.constant 8.000000e+00 : f32
    %400 = vector.broadcast %cst_131 : f32 to vector<1x64xf32>
    %401 = arith.divf %399, %400 : vector<1x64xf32>
    %402 = vector.broadcast %401 : vector<1x64xf32> to vector<8x64xf32>
    %403 = arith.subf %397, %402 : vector<8x64xf32>
    %404 = arith.mulf %403, %403 : vector<8x64xf32>
    %cst_132 = arith.constant dense<0.000000e+00> : vector<64xf32>
    %405 = vector.multi_reduction <add>, %404, %cst_132 [0] : vector<8x64xf32> to vector<64xf32>
    %406 = vector.shape_cast %405 : vector<64xf32> to vector<1x64xf32>
    %cst_133 = arith.constant 8.000000e+00 : f32
    %407 = vector.broadcast %cst_133 : f32 to vector<1x64xf32>
    %408 = arith.divf %406, %407 : vector<1x64xf32>
    %cst_134 = arith.constant 9.99999974E-6 : f32
    %409 = vector.broadcast %cst_134 : f32 to vector<1x64xf32>
    %410 = arith.addf %408, %409 : vector<1x64xf32>
    %411 = math.rsqrt %410 : vector<1x64xf32>
    %412 = arith.mulf %411, %5 : vector<1x64xf32>
    %413 = vector.broadcast %412 : vector<1x64xf32> to vector<8x64xf32>
    %414 = arith.mulf %403, %413 : vector<8x64xf32>
    %415 = vector.broadcast %6 : vector<1x64xf32> to vector<8x64xf32>
    %416 = arith.addf %414, %415 : vector<8x64xf32>
    %c40_135 = arith.constant 40 : index
    %c0_136 = arith.constant 0 : index
    %417 = vector.load %arg7[%c40_135, %c0_136] : memref<48x64xf32, #tpu.memory_space<vmem>>, vector<8x64xf32>
    tpu.vector_store %arg7[%c40_135, %c0_136], %416 {strides = array<i32>} : memref<48x64xf32, #tpu.memory_space<vmem>>, vector<8x64xf32>,
    %c0_137 = arith.constant 0 : index
    %c0_138 = arith.constant 0 : index
    %418 = vector.load %arg7[%c0_137, %c0_138] : memref<48x64xf32, #tpu.memory_space<vmem>>, vector<48x64xf32>
    %419 = arith.truncf %418 : vector<48x64xf32> to vector<48x64xbf16>
    %c0_139 = arith.constant 0 : index
    %c0_140 = arith.constant 0 : index
    %420 = vector.load %arg3[%c0_139, %c0_140] : memref<64x128xbf16, #tpu.memory_space<vmem>>, vector<64x128xbf16>
    %cst_141 = arith.constant dense<0.000000e+00> : vector<48x128xf32>
    %421 = tpu.matmul %419, %420, %cst_141 {dimension_numbers = #tpu.dot_dimension_numbers<[1], [0], [0], [1], [0, 0, 1, 1], [], []>} : vector<48x64xbf16>, vector<64x128xbf16>, vector<48x128xf32> -> vector<48x128xf32>
    %cst_142 = arith.constant 0.000000e+00 : f32
    %422 = vector.broadcast %cst_142 : f32 to vector<8x128xf32>
    %cst_143 = arith.constant 0.000000e+00 : f32
    %423 = vector.broadcast %cst_143 : f32 to vector<8x128xf32>
    %424 = vector.extract_strided_slice %421 {offsets = [0, 0], sizes = [8, 128], strides = [1, 1]} : vector<48x128xf32> to vector<8x128xf32>
    %425 = arith.addf %423, %424 : vector<8x128xf32>
    %426 = arith.subf %425, %422 : vector<8x128xf32>
    %cst_144 = arith.constant 1.000000e-01 : f32
    %427 = vector.broadcast %cst_144 : f32 to vector<8x128xf32>
    %428 = arith.mulf %427, %426 : vector<8x128xf32>
    %429 = arith.addf %422, %428 : vector<8x128xf32>
    %cst_145 = arith.constant 8.000000e-01 : f32
    %430 = vector.broadcast %cst_145 : f32 to vector<8x128xf32>
    %431 = arith.mulf %425, %430 : vector<8x128xf32>
    %c0_146 = arith.constant 0 : index
    %c0_147 = arith.constant 0 : index
    %c0_148 = arith.constant 0 : index
    %432 = vector.load %arg5[%c0_146, %c0_147, %c0_148] : memref<6x8x128xf32, #tpu.memory_space<vmem>>, vector<1x8x128xf32>
    %433 = vector.shape_cast %432 : vector<1x8x128xf32> to vector<8x128xf32>
    %434 = vector.shape_cast %429 : vector<8x128xf32> to vector<1x8x128xf32>
    tpu.vector_store %arg5[%c0_146, %c0_147, %c0_148], %434 {strides = array<i32>} : memref<6x8x128xf32, #tpu.memory_space<vmem>>, vector<1x8x128xf32>,
    %435 = vector.extract_strided_slice %421 {offsets = [8, 0], sizes = [8, 128], strides = [1, 1]} : vector<48x128xf32> to vector<8x128xf32>
    %436 = arith.addf %431, %435 : vector<8x128xf32>
    %437 = arith.subf %436, %429 : vector<8x128xf32>
    %cst_149 = arith.constant 1.000000e-01 : f32
    %438 = vector.broadcast %cst_149 : f32 to vector<8x128xf32>
    %439 = arith.mulf %438, %437 : vector<8x128xf32>
    %440 = arith.addf %429, %439 : vector<8x128xf32>
    %cst_150 = arith.constant 8.000000e-01 : f32
    %441 = vector.broadcast %cst_150 : f32 to vector<8x128xf32>
    %442 = arith.mulf %436, %441 : vector<8x128xf32>
    %c1 = arith.constant 1 : index
    %c0_151 = arith.constant 0 : index
    %c0_152 = arith.constant 0 : index
    %443 = vector.load %arg5[%c1, %c0_151, %c0_152] : memref<6x8x128xf32, #tpu.memory_space<vmem>>, vector<1x8x128xf32>
    %444 = vector.shape_cast %443 : vector<1x8x128xf32> to vector<8x128xf32>
    %445 = vector.shape_cast %440 : vector<8x128xf32> to vector<1x8x128xf32>
    tpu.vector_store %arg5[%c1, %c0_151, %c0_152], %445 {strides = array<i32>} : memref<6x8x128xf32, #tpu.memory_space<vmem>>, vector<1x8x128xf32>,
    %446 = vector.extract_strided_slice %421 {offsets = [16, 0], sizes = [8, 128], strides = [1, 1]} : vector<48x128xf32> to vector<8x128xf32>
    %447 = arith.addf %442, %446 : vector<8x128xf32>
    %448 = arith.subf %447, %440 : vector<8x128xf32>
    %cst_153 = arith.constant 1.000000e-01 : f32
    %449 = vector.broadcast %cst_153 : f32 to vector<8x128xf32>
    %450 = arith.mulf %449, %448 : vector<8x128xf32>
    %451 = arith.addf %440, %450 : vector<8x128xf32>
    %cst_154 = arith.constant 8.000000e-01 : f32
    %452 = vector.broadcast %cst_154 : f32 to vector<8x128xf32>
    %453 = arith.mulf %447, %452 : vector<8x128xf32>
    %c2 = arith.constant 2 : index
    %c0_155 = arith.constant 0 : index
    %c0_156 = arith.constant 0 : index
    %454 = vector.load %arg5[%c2, %c0_155, %c0_156] : memref<6x8x128xf32, #tpu.memory_space<vmem>>, vector<1x8x128xf32>
    %455 = vector.shape_cast %454 : vector<1x8x128xf32> to vector<8x128xf32>
    %456 = vector.shape_cast %451 : vector<8x128xf32> to vector<1x8x128xf32>
    tpu.vector_store %arg5[%c2, %c0_155, %c0_156], %456 {strides = array<i32>} : memref<6x8x128xf32, #tpu.memory_space<vmem>>, vector<1x8x128xf32>,
    %457 = vector.extract_strided_slice %421 {offsets = [24, 0], sizes = [8, 128], strides = [1, 1]} : vector<48x128xf32> to vector<8x128xf32>
    %458 = arith.addf %453, %457 : vector<8x128xf32>
    %459 = arith.subf %458, %451 : vector<8x128xf32>
    %cst_157 = arith.constant 1.000000e-01 : f32
    %460 = vector.broadcast %cst_157 : f32 to vector<8x128xf32>
    %461 = arith.mulf %460, %459 : vector<8x128xf32>
    %462 = arith.addf %451, %461 : vector<8x128xf32>
    %cst_158 = arith.constant 8.000000e-01 : f32
    %463 = vector.broadcast %cst_158 : f32 to vector<8x128xf32>
    %464 = arith.mulf %458, %463 : vector<8x128xf32>
    %c3 = arith.constant 3 : index
    %c0_159 = arith.constant 0 : index
    %c0_160 = arith.constant 0 : index
    %465 = vector.load %arg5[%c3, %c0_159, %c0_160] : memref<6x8x128xf32, #tpu.memory_space<vmem>>, vector<1x8x128xf32>
    %466 = vector.shape_cast %465 : vector<1x8x128xf32> to vector<8x128xf32>
    %467 = vector.shape_cast %462 : vector<8x128xf32> to vector<1x8x128xf32>
    tpu.vector_store %arg5[%c3, %c0_159, %c0_160], %467 {strides = array<i32>} : memref<6x8x128xf32, #tpu.memory_space<vmem>>, vector<1x8x128xf32>,
    %468 = vector.extract_strided_slice %421 {offsets = [32, 0], sizes = [8, 128], strides = [1, 1]} : vector<48x128xf32> to vector<8x128xf32>
    %469 = arith.addf %464, %468 : vector<8x128xf32>
    %470 = arith.subf %469, %462 : vector<8x128xf32>
    %cst_161 = arith.constant 1.000000e-01 : f32
    %471 = vector.broadcast %cst_161 : f32 to vector<8x128xf32>
    %472 = arith.mulf %471, %470 : vector<8x128xf32>
    %473 = arith.addf %462, %472 : vector<8x128xf32>
    %cst_162 = arith.constant 8.000000e-01 : f32
    %474 = vector.broadcast %cst_162 : f32 to vector<8x128xf32>
    %475 = arith.mulf %469, %474 : vector<8x128xf32>
    %c4 = arith.constant 4 : index
    %c0_163 = arith.constant 0 : index
    %c0_164 = arith.constant 0 : index
    %476 = vector.load %arg5[%c4, %c0_163, %c0_164] : memref<6x8x128xf32, #tpu.memory_space<vmem>>, vector<1x8x128xf32>
    %477 = vector.shape_cast %476 : vector<1x8x128xf32> to vector<8x128xf32>
    %478 = vector.shape_cast %473 : vector<8x128xf32> to vector<1x8x128xf32>
    tpu.vector_store %arg5[%c4, %c0_163, %c0_164], %478 {strides = array<i32>} : memref<6x8x128xf32, #tpu.memory_space<vmem>>, vector<1x8x128xf32>,
    %479 = vector.extract_strided_slice %421 {offsets = [40, 0], sizes = [8, 128], strides = [1, 1]} : vector<48x128xf32> to vector<8x128xf32>
    %480 = arith.addf %475, %479 : vector<8x128xf32>
    %481 = arith.subf %480, %473 : vector<8x128xf32>
    %cst_165 = arith.constant 1.000000e-01 : f32
    %482 = vector.broadcast %cst_165 : f32 to vector<8x128xf32>
    %483 = arith.mulf %482, %481 : vector<8x128xf32>
    %484 = arith.addf %473, %483 : vector<8x128xf32>
    %c5 = arith.constant 5 : index
    %c0_166 = arith.constant 0 : index
    %c0_167 = arith.constant 0 : index
    %485 = vector.load %arg5[%c5, %c0_166, %c0_167] : memref<6x8x128xf32, #tpu.memory_space<vmem>>, vector<1x8x128xf32>
    %486 = vector.shape_cast %485 : vector<1x8x128xf32> to vector<8x128xf32>
    %487 = vector.shape_cast %484 : vector<8x128xf32> to vector<1x8x128xf32>
    tpu.vector_store %arg5[%c5, %c0_166, %c0_167], %487 {strides = array<i32>} : memref<6x8x128xf32, #tpu.memory_space<vmem>>, vector<1x8x128xf32>,
    return
  }
}

</mosaic_0001>

<llo_original>
// kernel: seqnet_forward.1
$region0: #{seqnet_forward.1}
  #allocation0 [shape = 'u32[]', space=smem, size = 0x4, offset = 0x4, fixed_abs, tag = 'smem constant byte address 0x4 - core index']
  #allocation1 [shape = 'u32[144,128]{1,0:T(1,128)}', space=vmem, size = 0x12000, scoped, tag = 'internal scratch']
  #allocation2 [shape = 'f32[48,64]{1,0:T(8,128)}', space=vmem, size = 0x6000, scoped, tag = 'scratch operand']
  #allocation3 [shape = 'f32[48,64]{1,0:T(8,128)}', space=vmem, size = 0x6000, scoped, tag = 'scratch operand']
  %s0 = inlined_call_operand.vmem [shape: bf16[48,784], index: 0, kind: input, shape index: {}]
  %s1 = inlined_call_operand.vmem [shape: bf16[784,64], index: 1, kind: input, shape index: {}]
  %s2 = inlined_call_operand.vmem [shape: bf16[64,64], index: 2, kind: input, shape index: {}]
  %s3 = inlined_call_operand.vmem [shape: bf16[64,128], index: 3, kind: input, shape index: {}]
  %s4 = inlined_call_operand.vmem [shape: f32[8,64], index: 4, kind: input, shape index: {}]
  %s5 = inlined_call_operand.hbm [shape: f32[6,8,128], index: 5, kind: output, shape index: {}]
  %s6 = sld [smem:[#allocation0]]
  $region30: #{seqnet_forward.1} parent=0
    _
  %s8 = ssub.s32 1, %s6
  %s9 = scalar_select 0, %s8, %s6
  $region1: #{seqnet_forward.1} parent=0
    #allocation4 [shape = 'u8[24576]{0}', space=vmem, size = 0x6000, scoped, tag = 'output window, operand 0, single buffered']
    #allocation5 [shape = 's32[1]{0}', space=sflag, size = 0x4, scoped, tag = 'scoped memory for seqnet_forward.1']
    %10 = vsyncpa [#allocation5], 0
    // Predicated region
    $region2: #{seqnet_forward.1} parent=1 // pred_check
      _
    $region3: #{seqnet_forward.1} parent=1 // pred_check_branch
      %12 = sbr.rel (0) target = $region5
    $region4: #{seqnet_forward.1} parent=1 // pred_region
      _
    $region5: #{seqnet_forward.1} parent=1 // pred_fallthru
      _
    // Predicated region
    $region6: #{seqnet_forward.1} parent=1 // pred_check
      _
    $region7: #{seqnet_forward.1} parent=1 // pred_check_branch
      %14 = sbr.rel (0) target = $region9
    $region8: #{seqnet_forward.1} parent=1 // pred_region
      _
    $region9: #{seqnet_forward.1} parent=1 // pred_fallthru
      _
    // Predicated region
    $region10: #{seqnet_forward.1} parent=1 // pred_check
      _
    $region11: #{seqnet_forward.1} parent=1 // pred_check_branch
      %16 = sbr.rel (0) target = $region13
    $region12: #{seqnet_forward.1} parent=1 // pred_region
      _
    $region13: #{seqnet_forward.1} parent=1 // pred_fallthru
      _
    // Predicated region
    $region14: #{seqnet_forward.1} parent=1 // pred_check
      _
    $region15: #{seqnet_forward.1} parent=1 // pred_check_branch
      %18 = sbr.rel (0) target = $region17
    $region16: #{seqnet_forward.1} parent=1 // pred_region
      _
    $region17: #{seqnet_forward.1} parent=1 // pred_fallthru
      _
    // Predicated region
    $region18: #{seqnet_forward.1} parent=1 // pred_check
      _
    $region19: #{seqnet_forward.1} parent=1 // pred_check_branch
      %20 = sbr.rel (0) target = $region21
    $region20: #{seqnet_forward.1} parent=1 // pred_region
      _
    $region21: #{seqnet_forward.1} parent=1 // pred_fallthru
      _
    %v22 = vld [vmem:[%s4] sm:$0xff]
    %v23 = vld [vmem:[%s0] sm:$0xff]
    %v24 = vld [vmem:[%s0 + $0x8] sm:$0xff]
    %v25 = vld [vmem:[%s0 + $0x10] sm:$0xff]
    %v26 = vld [vmem:[%s0 + $0x18] sm:$0xf]
    %v27 = vld [vmem:[%s0 + $0x1c] sm:$0xff]
    %v28 = vld [vmem:[%s0 + $0x24] sm:$0xff]
    %v29 = vld [vmem:[%s0 + $0x2c] sm:$0xff]
    %v30 = vld [vmem:[%s0 + $0x34] sm:$0xf]
    %v31 = vld [vmem:[%s0 + $0x38] sm:$0xff]
    %v32 = vld [vmem:[%s0 + $0x40] sm:$0xff]
    %v33 = vld [vmem:[%s0 + $0x48] sm:$0xff]
    %v34 = vld [vmem:[%s0 + $0x50] sm:$0xf]
    %v35 = vld [vmem:[%s0 + $0x54] sm:$0xff]
    %v36 = vld [vmem:[%s0 + $0x5c] sm:$0xff]
    %v37 = vld [vmem:[%s0 + $0x64] sm:$0xff]
    %v38 = vld [vmem:[%s0 + $0x6c] sm:$0xf]
    %v39 = vld [vmem:[%s0 + $0x70] sm:$0xff]
    %v40 = vld [vmem:[%s0 + $0x78] sm:$0xff]
    %v41 = vld [vmem:[%s0 + $0x80] sm:$0xff]
    %v42 = vld [vmem:[%s0 + $0x88] sm:$0xf]
    %v43 = vld [vmem:[%s0 + $0x8c] sm:$0xff]
    %v44 = vld [vmem:[%s0 + $0x94] sm:$0xff]
    %v45 = vld [vmem:[%s0 + $0x9c] sm:$0xff]
    %v46 = vld [vmem:[%s0 + $0xa4] sm:$0xf]
    %v47 = vld [vmem:[%s1] sm:$0xf]
    %v48 = vld [vmem:[%s1 + $0x4] sm:$0xf]
    %v49 = vld [vmem:[%s1 + $0x8] sm:$0xf]
    %v50 = vld [vmem:[%s1 + $0xc] sm:$0xf]
    %v51 = vld [vmem:[%s1 + $0x10] sm:$0xf]
    %v52 = vld [vmem:[%s1 + $0x14] sm:$0xf]
    %v53 = vld [vmem:[%s1 + $0x18] sm:$0xf]
    %v54 = vld [vmem:[%s1 + $0x1c] sm:$0xf]
    %v55 = vld [vmem:[%s1 + $0x20] sm:$0xf]
    %v56 = vld [vmem:[%s1 + $0x24] sm:$0xf]
    %v57 = vld [vmem:[%s1 + $0x28] sm:$0xf]
    %v58 = vld [vmem:[%s1 + $0x2c] sm:$0xf]
    %v59 = vld [vmem:[%s1 + $0x30] sm:$0xf]
    %v60 = vld [vmem:[%s1 + $0x34] sm:$0xf]
    %v61 = vld [vmem:[%s1 + $0x38] sm:$0xf]
    %v62 = vld [vmem:[%s1 + $0x3c] sm:$0xf]
    %v63 = vld [vmem:[%s1 + $0x40] sm:$0xf]
    %v64 = vld [vmem:[%s1 + $0x44] sm:$0xf]
    %v65 = vld [vmem:[%s1 + $0x48] sm:$0xf]
    %v66 = vld [vmem:[%s1 + $0x4c] sm:$0xf]
    %v67 = vld [vmem:[%s1 + $0x50] sm:$0xf]
    %v68 = vld [vmem:[%s1 + $0x54] sm:$0xf]
    %v69 = vld [vmem:[%s1 + $0x58] sm:$0xf]
    %v70 = vld [vmem:[%s1 + $0x5c] sm:$0xf]
    %v71 = vld [vmem:[%s1 + $0x60] sm:$0xf]
    %v72 = vld [vmem:[%s1 + $0x64] sm:$0xf]
    %v73 = vld [vmem:[%s1 + $0x68] sm:$0xf]
    %v74 = vld [vmem:[%s1 + $0x6c] sm:$0xf]
    %v75 = vld [vmem:[%s1 + $0x70] sm:$0xf]
    %v76 = vld [vmem:[%s1 + $0x74] sm:$0xf]
    %v77 = vld [vmem:[%s1 + $0x78] sm:$0xf]
    %v78 = vld [vmem:[%s1 + $0x7c] sm:$0xf]
    %v79 = vld [vmem:[%s1 + $0x80] sm:$0xf]
    %v80 = vld [vmem:[%s1 + $0x84] sm:$0xf]
    %v81 = vld [vmem:[%s1 + $0x88] sm:$0xf]
    %v82 = vld [vmem:[%s1 + $0x8c] sm:$0xf]
    %v83 = vld [vmem:[%s1 + $0x90] sm:$0xf]
    %v84 = vld [vmem:[%s1 + $0x94] sm:$0xf]
    %v85 = vld [vmem:[%s1 + $0x98] sm:$0xf]
    %v86 = vld [vmem:[%s1 + $0x9c] sm:$0xf]
    %v87 = vld [vmem:[%s1 + $0xa0] sm:$0xf]
    %v88 = vld [vmem:[%s1 + $0xa4] sm:$0xf]
    %v89 = vld [vmem:[%s1 + $0xa8] sm:$0xf]
    %v90 = vld [vmem:[%s1 + $0xac] sm:$0xf]
    %v91 = vld [vmem:[%s1 + $0xb0] sm:$0xf]
    %v92 = vld [vmem:[%s1 + $0xb4] sm:$0xf]
    %v93 = vld [vmem:[%s1 + $0xb8] sm:$0xf]
    %v94 = vld [vmem:[%s1 + $0xbc] sm:$0xf]
    %v95 = vld [vmem:[%s1 + $0xc0] sm:$0xf]
    %v96 = vld [vmem:[%s1 + $0xc4] sm:$0xf]
    %v97 = vld [vmem:[%s1 + $0xc8] sm:$0xf]
    %v98 = vld [vmem:[%s1 + $0xcc] sm:$0xf]
    %v99 = vld [vmem:[%s1 + $0xd0] sm:$0xf]
    %v100 = vld [vmem:[%s1 + $0xd4] sm:$0xf]
    %v101 = vld [vmem:[%s1 + $0xd8] sm:$0xf]
    %v102 = vld [vmem:[%s1 + $0xdc] sm:$0xf]
    %v103 = vld [vmem:[%s1 + $0xe0] sm:$0xf]
    %v104 = vld [vmem:[%s1 + $0xe4] sm:$0xf]
    %v105 = vld [vmem:[%s1 + $0xe8] sm:$0xf]
    %v106 = vld [vmem:[%s1 + $0xec] sm:$0xf]
    %v107 = vld [vmem:[%s1 + $0xf0] sm:$0xf]
    %v108 = vld [vmem:[%s1 + $0xf4] sm:$0xf]
    %v109 = vld [vmem:[%s1 + $0xf8] sm:$0xf]
    %v110 = vld [vmem:[%s1 + $0xfc] sm:$0xf]
    %v111 = vld [vmem:[%s1 + $0x100] sm:$0xf]
    %v112 = vld [vmem:[%s1 + $0x104] sm:$0xf]
    %v113 = vld [vmem:[%s1 + $0x108] sm:$0xf]
    %v114 = vld [vmem:[%s1 + $0x10c] sm:$0xf]
    %v115 = vld [vmem:[%s1 + $0x110] sm:$0xf]
    %v116 = vld [vmem:[%s1 + $0x114] sm:$0xf]
    %v117 = vld [vmem:[%s1 + $0x118] sm:$0xf]
    %v118 = vld [vmem:[%s1 + $0x11c] sm:$0xf]
    %v119 = vld [vmem:[%s1 + $0x120] sm:$0xf]
    %v120 = vld [vmem:[%s1 + $0x124] sm:$0xf]
    %v121 = vld [vmem:[%s1 + $0x128] sm:$0xf]
    %v122 = vld [vmem:[%s1 + $0x12c] sm:$0xf]
    %v123 = vld [vmem:[%s1 + $0x130] sm:$0xf]
    %v124 = vld [vmem:[%s1 + $0x134] sm:$0xf]
    %v125 = vld [vmem:[%s1 + $0x138] sm:$0xf]
    %v126 = vld [vmem:[%s1 + $0x13c] sm:$0xf]
    %v127 = vld [vmem:[%s1 + $0x140] sm:$0xf]
    %v128 = vld [vmem:[%s1 + $0x144] sm:$0xf]
    %v129 = vld [vmem:[%s1 + $0x148] sm:$0xf]
    %v130 = vld [vmem:[%s1 + $0x14c] sm:$0xf]
    %v131 = vld [vmem:[%s1 + $0x150] sm:$0xf]
    %v132 = vld [vmem:[%s1 + $0x154] sm:$0xf]
    %v133 = vld [vmem:[%s1 + $0x158] sm:$0xf]
    %v134 = vld [vmem:[%s1 + $0x15c] sm:$0xf]
    %v135 = vld [vmem:[%s1 + $0x160] sm:$0xf]
    %v136 = vld [vmem:[%s1 + $0x164] sm:$0xf]
    %v137 = vld [vmem:[%s1 + $0x168] sm:$0xf]
    %v138 = vld [vmem:[%s1 + $0x16c] sm:$0xf]
    %v139 = vld [vmem:[%s1 + $0x170] sm:$0xf]
    %v140 = vld [vmem:[%s1 + $0x174] sm:$0xf]
    %v141 = vld [vmem:[%s1 + $0x178] sm:$0xf]
    %v142 = vld [vmem:[%s1 + $0x17c] sm:$0xf]
    %v143 = vld [vmem:[%s1 + $0x180] sm:$0xf]
    %v144 = vld [vmem:[%s1 + $0x184] sm:$0xf]
    %v145 = vlaneseq
    %v146 = vshrl.u32 %v145, 7
    %v147 = vsub.s32 0, %v146
    %v148 = vrot.slane %v22, %v147
    %v173 = vunpack.c.l.b16 %v23
    %v174 = vunpack.c.h.b16 %v23
    %v175 = vunpack.c.l.b16 %v24
    %v176 = vunpack.c.h.b16 %v24
    %v177 = vunpack.c.l.b16 %v25
    %v178 = vunpack.c.h.b16 %v25
    %v179 = vunpack.c.l.b16 %v26
    %v180 = vunpack.c.l.b16 %v27
    %v181 = vunpack.c.h.b16 %v27
    %v182 = vunpack.c.l.b16 %v28
    %v183 = vunpack.c.h.b16 %v28
    %v184 = vunpack.c.l.b16 %v29
    %v185 = vunpack.c.h.b16 %v29
    %v186 = vunpack.c.l.b16 %v30
    %v187 = vunpack.c.l.b16 %v31
    %v188 = vunpack.c.h.b16 %v31
    %v189 = vunpack.c.l.b16 %v32
    %v190 = vunpack.c.h.b16 %v32
    %v191 = vunpack.c.l.b16 %v33
    %v192 = vunpack.c.h.b16 %v33
    %v193 = vunpack.c.l.b16 %v34
    %v194 = vunpack.c.l.b16 %v35
    %v195 = vunpack.c.h.b16 %v35
    %v196 = vunpack.c.l.b16 %v36
    %v197 = vunpack.c.h.b16 %v36
    %v198 = vunpack.c.l.b16 %v37
    %v199 = vunpack.c.h.b16 %v37
    %v200 = vunpack.c.l.b16 %v38
    %v201 = vunpack.c.l.b16 %v39
    %v202 = vunpack.c.h.b16 %v39
    %v203 = vunpack.c.l.b16 %v40
    %v204 = vunpack.c.h.b16 %v40
    %v205 = vunpack.c.l.b16 %v41
    %v206 = vunpack.c.h.b16 %v41
    %v207 = vunpack.c.l.b16 %v42
    %v208 = vunpack.c.l.b16 %v43
    %v209 = vunpack.c.h.b16 %v43
    %v210 = vunpack.c.l.b16 %v44
    %v211 = vunpack.c.h.b16 %v44
    %v212 = vunpack.c.l.b16 %v45
    %v213 = vunpack.c.h.b16 %v45
    %v214 = vunpack.c.l.b16 %v46
    %v215 = vpack.c.b16 %v180, %v173
    %v216 = vpack.c.b16 %v181, %v174
    %v217 = vpack.c.b16 %v182, %v175
    %v218 = vpack.c.b16 %v183, %v176
    %v219 = vpack.c.b16 %v184, %v177
    %v220 = vpack.c.b16 %v185, %v178
    %v221 = vpack.c.b16 %v186, %v179
    %v222 = vpack.c.b16 %v194, %v187
    %v223 = vpack.c.b16 %v195, %v188
    %v224 = vpack.c.b16 %v196, %v189
    %v225 = vpack.c.b16 %v197, %v190
    %v226 = vpack.c.b16 %v198, %v191
    %v227 = vpack.c.b16 %v199, %v192
    %v228 = vpack.c.b16 %v200, %v193
    %v229 = vpack.c.b16 %v208, %v201
    %v230 = vpack.c.b16 %v209, %v202
    %v231 = vpack.c.b16 %v210, %v203
    %v232 = vpack.c.b16 %v211, %v204
    %v233 = vpack.c.b16 %v212, %v205
    %v234 = vpack.c.b16 %v213, %v206
    %v235 = vpack.c.b16 %v214, %v207
    %v352 = vunpack.c.l.b16 %v47
    %v353 = vunpack.c.l.b16 %v48
    %v354 = vunpack.c.l.b16 %v49
    %v355 = vunpack.c.l.b16 %v50
    %v356 = vunpack.c.l.b16 %v51
    %v357 = vunpack.c.l.b16 %v52
    %v358 = vunpack.c.l.b16 %v53
    %v359 = vunpack.c.l.b16 %v54
    %v360 = vunpack.c.l.b16 %v55
    %v361 = vunpack.c.l.b16 %v56
    %v362 = vunpack.c.l.b16 %v57
    %v363 = vunpack.c.l.b16 %v58
    %v364 = vunpack.c.l.b16 %v59
    %v365 = vunpack.c.l.b16 %v60
    %v366 = vunpack.c.l.b16 %v61
    %v367 = vunpack.c.l.b16 %v62
    %v368 = vunpack.c.l.b16 %v63
    %v369 = vunpack.c.l.b16 %v64
    %v370 = vunpack.c.l.b16 %v65
    %v371 = vunpack.c.l.b16 %v66
    %v372 = vunpack.c.l.b16 %v67
    %v373 = vunpack.c.l.b16 %v68
    %v374 = vunpack.c.l.b16 %v69
    %v375 = vunpack.c.l.b16 %v70
    %v376 = vunpack.c.l.b16 %v71
    %v377 = vunpack.c.l.b16 %v72
    %v378 = vunpack.c.l.b16 %v73
    %v379 = vunpack.c.l.b16 %v74
    %v380 = vunpack.c.l.b16 %v75
    %v381 = vunpack.c.l.b16 %v76
    %v382 = vunpack.c.l.b16 %v77
    %v383 = vunpack.c.l.b16 %v78
    %v384 = vunpack.c.l.b16 %v79
    %v385 = vunpack.c.l.b16 %v80
    %v386 = vunpack.c.l.b16 %v81
    %v387 = vunpack.c.l.b16 %v82
    %v388 = vunpack.c.l.b16 %v83
    %v389 = vunpack.c.l.b16 %v84
    %v390 = vunpack.c.l.b16 %v85
    %v391 = vunpack.c.l.b16 %v86
    %v392 = vunpack.c.l.b16 %v87
    %v393 = vunpack.c.l.b16 %v88
    %v394 = vunpack.c.l.b16 %v89
    %v395 = vunpack.c.l.b16 %v90
    %v396 = vunpack.c.l.b16 %v91
    %v397 = vunpack.c.l.b16 %v92
    %v398 = vunpack.c.l.b16 %v93
    %v399 = vunpack.c.l.b16 %v94
    %v400 = vunpack.c.l.b16 %v95
    %v401 = vunpack.c.l.b16 %v96
    %v402 = vunpack.c.l.b16 %v97
    %v403 = vunpack.c.l.b16 %v98
    %v404 = vunpack.c.l.b16 %v99
    %v405 = vunpack.c.l.b16 %v100
    %v406 = vunpack.c.l.b16 %v101
    %v407 = vunpack.c.l.b16 %v102
    %v408 = vunpack.c.l.b16 %v103
    %v409 = vunpack.c.l.b16 %v104
    %v410 = vunpack.c.l.b16 %v105
    %v411 = vunpack.c.l.b16 %v106
    %v412 = vunpack.c.l.b16 %v107
    %v413 = vunpack.c.l.b16 %v108
    %v414 = vunpack.c.l.b16 %v109
    %v415 = vunpack.c.l.b16 %v110
    %v416 = vunpack.c.l.b16 %v111
    %v417 = vunpack.c.l.b16 %v112
    %v418 = vunpack.c.l.b16 %v113
    %v419 = vunpack.c.l.b16 %v114
    %v420 = vunpack.c.l.b16 %v115
    %v421 = vunpack.c.l.b16 %v116
    %v422 = vunpack.c.l.b16 %v117
    %v423 = vunpack.c.l.b16 %v118
    %v424 = vunpack.c.l.b16 %v119
    %v425 = vunpack.c.l.b16 %v120
    %v426 = vunpack.c.l.b16 %v121
    %v427 = vunpack.c.l.b16 %v122
    %v428 = vunpack.c.l.b16 %v123
    %v429 = vunpack.c.l.b16 %v124
    %v430 = vunpack.c.l.b16 %v125
    %v431 = vunpack.c.l.b16 %v126
    %v432 = vunpack.c.l.b16 %v127
    %v433 = vunpack.c.l.b16 %v128
    %v434 = vunpack.c.l.b16 %v129
    %v435 = vunpack.c.l.b16 %v130
    %v436 = vunpack.c.l.b16 %v131
    %v437 = vunpack.c.l.b16 %v132
    %v438 = vunpack.c.l.b16 %v133
    %v439 = vunpack.c.l.b16 %v134
    %v440 = vunpack.c.l.b16 %v135
    %v441 = vunpack.c.l.b16 %v136
    %v442 = vunpack.c.l.b16 %v137
    %v443 = vunpack.c.l.b16 %v138
    %v444 = vunpack.c.l.b16 %v139
    %v445 = vunpack.c.l.b16 %v140
    %v446 = vunpack.c.l.b16 %v141
    %v447 = vunpack.c.l.b16 %v142
    %v448 = vunpack.c.l.b16 %v143
    %v449 = vunpack.c.l.b16 %v144
    %v450 = vpack.c.b16 %v353, %v352
    %v451 = vpack.c.b16 %v355, %v354
    %v452 = vpack.c.b16 %v357, %v356
    %v453 = vpack.c.b16 %v359, %v358
    %v454 = vpack.c.b16 %v361, %v360
    %v455 = vpack.c.b16 %v363, %v362
    %v456 = vpack.c.b16 %v365, %v364
    %v457 = vpack.c.b16 %v367, %v366
    %v458 = vpack.c.b16 %v369, %v368
    %v459 = vpack.c.b16 %v371, %v370
    %v460 = vpack.c.b16 %v373, %v372
    %v461 = vpack.c.b16 %v375, %v374
    %v462 = vpack.c.b16 %v377, %v376
    %v463 = vpack.c.b16 %v379, %v378
    %v464 = vpack.c.b16 %v381, %v380
    %v465 = vpack.c.b16 %v383, %v382
    %v466 = vpack.c.b16 %v385, %v384
    %v467 = vpack.c.b16 %v387, %v386
    %v468 = vpack.c.b16 %v389, %v388
    %v469 = vpack.c.b16 %v391, %v390
    %v470 = vpack.c.b16 %v393, %v392
    %v471 = vpack.c.b16 %v395, %v394
    %v472 = vpack.c.b16 %v397, %v396
    %v473 = vpack.c.b16 %v399, %v398
    %v474 = vpack.c.b16 %v401, %v400
    %v475 = vpack.c.b16 %v403, %v402
    %v476 = vpack.c.b16 %v405, %v404
    %v477 = vpack.c.b16 %v407, %v406
    %v478 = vpack.c.b16 %v409, %v408
    %v479 = vpack.c.b16 %v411, %v410
    %v480 = vpack.c.b16 %v413, %v412
    %v481 = vpack.c.b16 %v415, %v414
    %v482 = vpack.c.b16 %v417, %v416
    %v483 = vpack.c.b16 %v419, %v418
    %v484 = vpack.c.b16 %v421, %v420
    %v485 = vpack.c.b16 %v423, %v422
    %v486 = vpack.c.b16 %v425, %v424
    %v487 = vpack.c.b16 %v427, %v426
    %v488 = vpack.c.b16 %v429, %v428
    %v489 = vpack.c.b16 %v431, %v430
    %v490 = vpack.c.b16 %v433, %v432
    %v491 = vpack.c.b16 %v435, %v434
    %v492 = vpack.c.b16 %v437, %v436
    %v493 = vpack.c.b16 %v439, %v438
    %v494 = vpack.c.b16 %v441, %v440
    %v495 = vpack.c.b16 %v443, %v442
    %v496 = vpack.c.b16 %v445, %v444
    %v497 = vpack.c.b16 %v447, %v446
    %v498 = vpack.c.b16 %v449, %v448
    %vm548 = vcmask 130048
    %v550 = vsel %vm548, %v221, 0
    %v553 = vsel %vm548, %v228, 0
    %v556 = vsel %vm548, %v235, 0
    %558 = vmatprep.subr.bf16.mxu0 0
    %559 = vmatpush1.bf16.msra.mxu0 %v457
    %560 = vmatprep.subr.bf16.mxu0 0
    %561 = vmatpush1.bf16.msra.mxu0 %v456
    %562 = vmatprep.subr.bf16.mxu0 0
    %563 = vmatpush1.bf16.msra.mxu0 %v455
    %564 = vmatprep.subr.bf16.mxu0 0
    %565 = vmatpush1.bf16.msra.mxu0 %v454
    %566 = vmatprep.subr.bf16.mxu0 0
    %567 = vmatpush1.bf16.msra.mxu0 %v453
    %568 = vmatprep.subr.bf16.mxu0 0
    %569 = vmatpush1.bf16.msra.mxu0 %v452
    %570 = vmatprep.subr.bf16.mxu0 0
    %571 = vmatpush1.bf16.msra.mxu0 %v451
    %572 = vmatprep.subr.bf16.mxu0 0
    %573 = vmatpush1.bf16.msra.mxu0 %v450
    %574 = vmatprep.subr.bf16.mxu0 0
    %575 = vmatpush2.bf16.msra.mxu0 %v465
    %576 = vmatprep.subr.bf16.mxu0 0
    %577 = vmatpush2.bf16.msra.mxu0 %v464
    %578 = vmatprep.subr.bf16.mxu0 0
    %579 = vmatpush2.bf16.msra.mxu0 %v463
    %580 = vmatprep.subr.bf16.mxu0 0
    %581 = vmatpush2.bf16.msra.mxu0 %v462
    %582 = vmatprep.subr.bf16.mxu0 0
    %583 = vmatpush2.bf16.msra.mxu0 %v461
    %584 = vmatprep.subr.bf16.mxu0 0
    %585 = vmatpush2.bf16.msra.mxu0 %v460
    %586 = vmatprep.subr.bf16.mxu0 0
    %587 = vmatpush2.bf16.msra.mxu0 %v459
    %588 = vmatprep.subr.bf16.mxu0 0
    %589 = vmatpush2.bf16.msra.mxu0 %v458
    %590 = vmatprep.mubr.bf16.mxu0 %v216
    %591 = vmatmul.mubr.bf16.gmra.mxu0 %v215
    %v592 = vpop.f32.mrf.mxu0
    %v593 = vadd.f32 %v148, %v592
    %v594 = vpop.f32.mrf.mxu0
    %v595 = vpop.f32.mrf.mxu0
    %v596 = vadd.f32 %v148, %v595
    %v597 = vpop.f32.mrf.mxu0
    %598 = vmatprep.mubr.bf16.mxu0 %v223
    %599 = vmatmul.mubr.bf16.gmra.mxu0 %v222
    %v600 = vpop.f32.mrf.mxu0
    %v601 = vadd.f32 %v148, %v600
    %v602 = vpop.f32.mrf.mxu0
    %v603 = vpop.f32.mrf.mxu0
    %v604 = vadd.f32 %v148, %v603
    %v605 = vpop.f32.mrf.mxu0
    %606 = vmatprep.mubr.bf16.mxu0 %v230
    %607 = vmatmul.mubr.bf16.gmra.mxu0 %v229
    %v608 = vpop.f32.mrf.mxu0
    %v609 = vadd.f32 %v148, %v608
    %v610 = vpop.f32.mrf.mxu0
    %v611 = vpop.f32.mrf.mxu0
    %v612 = vpop.f32.mrf.mxu0
    %613 = vdwg.mxu0
    %614 = vmatprep.subr.bf16.mxu0 0
    %615 = vmatpush1.bf16.msra.mxu0 %v473
    %616 = vmatprep.subr.bf16.mxu0 0
    %617 = vmatpush1.bf16.msra.mxu0 %v472
    %618 = vmatprep.subr.bf16.mxu0 0
    %619 = vmatpush1.bf16.msra.mxu0 %v471
    %620 = vmatprep.subr.bf16.mxu0 0
    %621 = vmatpush1.bf16.msra.mxu0 %v470
    %622 = vmatprep.subr.bf16.mxu0 0
    %623 = vmatpush1.bf16.msra.mxu0 %v469
    %624 = vmatprep.subr.bf16.mxu0 0
    %625 = vmatpush1.bf16.msra.mxu0 %v468
    %626 = vmatprep.subr.bf16.mxu0 0
    %627 = vmatpush1.bf16.msra.mxu0 %v467
    %628 = vmatprep.subr.bf16.mxu0 0
    %629 = vmatpush1.bf16.msra.mxu0 %v466
    %630 = vmatprep.subr.bf16.mxu0 0
    %631 = vmatpush2.bf16.msra.mxu0 %v481
    %632 = vmatprep.subr.bf16.mxu0 0
    %633 = vmatpush2.bf16.msra.mxu0 %v480
    %634 = vmatprep.subr.bf16.mxu0 0
    %635 = vmatpush2.bf16.msra.mxu0 %v479
    %636 = vmatprep.subr.bf16.mxu0 0
    %637 = vmatpush2.bf16.msra.mxu0 %v478
    %638 = vmatprep.subr.bf16.mxu0 0
    %639 = vmatpush2.bf16.msra.mxu0 %v477
    %640 = vmatprep.subr.bf16.mxu0 0
    %641 = vmatpush2.bf16.msra.mxu0 %v476
    %642 = vmatprep.subr.bf16.mxu0 0
    %643 = vmatpush2.bf16.msra.mxu0 %v475
    %644 = vmatprep.subr.bf16.mxu0 0
    %645 = vmatpush2.bf16.msra.mxu0 %v474
    %646 = vmatprep.mubr.bf16.mxu0 %v218
    %647 = vmatmul.mubr.bf16.gmra.mxu0 %v217
    %v648 = vpop.f32.mrf.mxu0
    %v649 = vadd.f32 %v593, %v648
    %v650 = vpop.f32.mrf.mxu0
    %v651 = vpop.f32.mrf.mxu0
    %v652 = vadd.f32 %v596, %v651
    %v653 = vpop.f32.mrf.mxu0
    %654 = vmatprep.mubr.bf16.mxu0 %v225
    %655 = vmatmul.mubr.bf16.gmra.mxu0 %v224
    %v656 = vpop.f32.mrf.mxu0
    %v657 = vadd.f32 %v601, %v656
    %v658 = vpop.f32.mrf.mxu0
    %v659 = vpop.f32.mrf.mxu0
    %v660 = vadd.f32 %v604, %v659
    %v661 = vpop.f32.mrf.mxu0
    %662 = vmatprep.mubr.bf16.mxu0 %v232
    %663 = vmatmul.mubr.bf16.gmra.mxu0 %v231
    %v664 = vpop.f32.mrf.mxu0
    %v665 = vadd.f32 %v609, %v664
    %v666 = vpop.f32.mrf.mxu0
    %v667 = vpop.f32.mrf.mxu0
    %v668 = vpop.f32.mrf.mxu0
    %669 = vdwg.mxu0
    %670 = vmatprep.subr.bf16.mxu0 0
    %671 = vmatpush1.bf16.msra.mxu0 %v489
    %672 = vmatprep.subr.bf16.mxu0 0
    %673 = vmatpush1.bf16.msra.mxu0 %v488
    %674 = vmatprep.subr.bf16.mxu0 0
    %675 = vmatpush1.bf16.msra.mxu0 %v487
    %676 = vmatprep.subr.bf16.mxu0 0
    %677 = vmatpush1.bf16.msra.mxu0 %v486
    %678 = vmatprep.subr.bf16.mxu0 0
    %679 = vmatpush1.bf16.msra.mxu0 %v485
    %680 = vmatprep.subr.bf16.mxu0 0
    %681 = vmatpush1.bf16.msra.mxu0 %v484
    %682 = vmatprep.subr.bf16.mxu0 0
    %683 = vmatpush1.bf16.msra.mxu0 %v483
    %684 = vmatprep.subr.bf16.mxu0 0
    %685 = vmatpush1.bf16.msra.mxu0 %v482
    %686 = vmatprep.subr.bf16.mxu0 0
    %687 = vmatpush2.bf16.msra.mxu0 %v497
    %688 = vmatprep.subr.bf16.mxu0 0
    %689 = vmatpush2.bf16.msra.mxu0 %v496
    %690 = vmatprep.subr.bf16.mxu0 0
    %691 = vmatpush2.bf16.msra.mxu0 %v495
    %692 = vmatprep.subr.bf16.mxu0 0
    %693 = vmatpush2.bf16.msra.mxu0 %v494
    %694 = vmatprep.subr.bf16.mxu0 0
    %695 = vmatpush2.bf16.msra.mxu0 %v493
    %696 = vmatprep.subr.bf16.mxu0 0
    %697 = vmatpush2.bf16.msra.mxu0 %v492
    %698 = vmatprep.subr.bf16.mxu0 0
    %699 = vmatpush2.bf16.msra.mxu0 %v491
    %700 = vmatprep.subr.bf16.mxu0 0
    %701 = vmatpush2.bf16.msra.mxu0 %v490
    %702 = vmatprep.mubr.bf16.mxu0 %v220
    %703 = vmatmul.mubr.bf16.gmra.mxu0 %v219
    %v704 = vpop.f32.mrf.mxu0
    %v705 = vadd.f32 %v649, %v704
    %v706 = vpop.f32.mrf.mxu0
    %v707 = vpop.f32.mrf.mxu0
    %v708 = vadd.f32 %v652, %v707
    %v709 = vpop.f32.mrf.mxu0
    %710 = vmatprep.mubr.bf16.mxu0 %v227
    %711 = vmatmul.mubr.bf16.gmra.mxu0 %v226
    %v712 = vpop.f32.mrf.mxu0
    %v713 = vadd.f32 %v657, %v712
    %v714 = vpop.f32.mrf.mxu0
    %v715 = vpop.f32.mrf.mxu0
    %v716 = vadd.f32 %v660, %v715
    %v717 = vpop.f32.mrf.mxu0
    %718 = vmatprep.mubr.bf16.mxu0 %v234
    %719 = vmatmul.mubr.bf16.gmra.mxu0 %v233
    %v720 = vpop.f32.mrf.mxu0
    %v721 = vadd.f32 %v665, %v720
    %v722 = vpop.f32.mrf.mxu0
    %v723 = vpop.f32.mrf.mxu0
    %v724 = vpop.f32.mrf.mxu0
    %725 = vdwg.mxu0
    %726 = vmatprep.subr.bf16.mxu0 0
    %727 = vmatpush1.bf16.msra.mxu0 0
    %728 = vmatprep.subr.bf16.mxu0 0
    %729 = vmatpush1.bf16.msra.mxu0 0
    %730 = vmatprep.subr.bf16.mxu0 0
    %731 = vmatpush1.bf16.msra.mxu0 0
    %732 = vmatprep.subr.bf16.mxu0 0
    %733 = vmatpush1.bf16.msra.mxu0 0
    %734 = vmatprep.subr.bf16.mxu0 0
    %735 = vmatpush1.bf16.msra.mxu0 0
    %736 = vmatprep.subr.bf16.mxu0 0
    %737 = vmatpush1.bf16.msra.mxu0 0
    %738 = vmatprep.subr.bf16.mxu0 0
    %739 = vmatpush1.bf16.msra.mxu0 0
    %740 = vmatprep.subr.bf16.mxu0 0
    %741 = vmatpush1.bf16.msra.mxu0 %v498
    %742 = vmatprep.subr.bf16.mxu0 0
    %743 = vmatpush2.bf16.msra.mxu0 0
    %744 = vmatprep.subr.bf16.mxu0 0
    %745 = vmatpush2.bf16.msra.mxu0 0
    %746 = vmatprep.subr.bf16.mxu0 0
    %747 = vmatpush2.bf16.msra.mxu0 0
    %748 = vmatprep.subr.bf16.mxu0 0
    %749 = vmatpush2.bf16.msra.mxu0 0
    %750 = vmatprep.subr.bf16.mxu0 0
    %751 = vmatpush2.bf16.msra.mxu0 0
    %752 = vmatprep.subr.bf16.mxu0 0
    %753 = vmatpush2.bf16.msra.mxu0 0
    %754 = vmatprep.subr.bf16.mxu0 0
    %755 = vmatpush2.bf16.msra.mxu0 0
    %756 = vmatprep.subr.bf16.mxu0 0
    %757 = vmatpush2.bf16.msra.mxu0 0
    %758 = vmatprep.mubr.bf16.mxu0 0
    %759 = vmatmul.mubr.bf16.gmra.mxu0 %v550
    %v760 = vpop.f32.mrf.mxu0
    %v761 = vadd.f32 %v705, %v760
    %v762 = vpop.f32.mrf.mxu0
    %v763 = vpop.f32.mrf.mxu0
    %v764 = vadd.f32 %v708, %v763
    %v765 = vpop.f32.mrf.mxu0
    %766 = vmatprep.mubr.bf16.mxu0 0
    %767 = vmatmul.mubr.bf16.gmra.mxu0 %v553
    %v768 = vpop.f32.mrf.mxu0
    %v769 = vadd.f32 %v713, %v768
    %v770 = vpop.f32.mrf.mxu0
    %v771 = vpop.f32.mrf.mxu0
    %v772 = vadd.f32 %v716, %v771
    %v773 = vpop.f32.mrf.mxu0
    %774 = vmatprep.mubr.bf16.mxu0 0
    %775 = vmatmul.mubr.bf16.gmra.mxu0 %v556
    %v776 = vpop.f32.mrf.mxu0
    %v777 = vadd.f32 %v721, %v776
    %v778 = vpop.f32.mrf.mxu0
    %v779 = vpop.f32.mrf.mxu0
    %v780 = vpop.f32.mrf.mxu0
    %781 = vdwg.mxu0
    %vm782 = vcmp.gt.f32.partialorder 0.0, 1.0
    %v783 = vadd.f32 %v761, 0.0
    %v784 = vsel %vm782, 1, 0
    %v785 = vcvt.s32.f32 %v784
    %v786 = vrot.slane %v785, 4
    %v787 = vadd.f32 %v785, %v786
    %v788 = vrot.slane %v787, 2
    %v789 = vadd.f32 %v787, %v788
    %v790 = vrot.slane %v789, 1
    %v791 = vadd.f32 %v789, %v790
    %v792 = vrcp.pop 8.0
    %v793 = vmul.f32 %v791, %v792
    %v794 = vsub.f32 %v785, %v793
    %v795 = vmul.f32 %v794, %v794
    %v796 = vrot.slane %v795, 4
    %v797 = vadd.f32 %v795, %v796
    %v798 = vrot.slane %v797, 2
    %v799 = vadd.f32 %v797, %v798
    %v800 = vrot.slane %v799, 1
    %v801 = vadd.f32 %v799, %v800
    %v802 = vmul.f32 %v801, %v792
    %v803 = vadd.f32 %v802, 1e-05
    %v804 = vrsqrt.pop %v803
    %v805 = vmul.f32 %v804, %v22
    %v806 = vlaneseq
    %v807 = vshrl.u32 %v806, 7
    %v808 = vsub.s32 1, %v807
    %v809 = vrot.slane %v805, %v808
    %v810 = vmul.f32 %v794, %v809
    %v811 = vlaneseq
    %v812 = vshrl.u32 %v811, 7
    %v813 = vsub.s32 2, %v812
    %v814 = vrot.slane %v22, %v813
    %v815 = vadd.f32 %v810, %v814
    %vm816 = vcmask 523264
    %817 = vst.msk [vmem:[#allocation2] sm:$0xff] %vm816, %v815
    %v818 = vmul.f32 %v783, 0.1
    %v819 = vadd.f32 %v818, 0.0
    %v820 = vmul.f32 %v783, 0.95
    %vm821 = vcmp.gt.f32.partialorder %v819, 1.0
    %v822 = vsel %vm821, 0.0, %v819
    %v823 = vadd.f32 %v820, %v764
    %v824 = vsel %vm821, 1, 0
    %v825 = vcvt.s32.f32 %v824
    %v826 = vsel %vm816, %v825, 0.0
    %v827 = vrot.slane %v826, 4
    %v828 = vadd.f32 %v826, %v827
    %v829 = vrot.slane %v828, 2
    %v830 = vadd.f32 %v828, %v829
    %v831 = vrot.slane %v830, 1
    %v832 = vadd.f32 %v830, %v831
    %v833 = vmul.f32 %v832, %v792
    %v834 = vsub.f32 %v825, %v833
    %v835 = vmul.f32 %v834, %v834
    %v836 = vsel %vm816, %v835, 0.0
    %v837 = vrot.slane %v836, 4
    %v838 = vadd.f32 %v836, %v837
    %v839 = vrot.slane %v838, 2
    %v840 = vadd.f32 %v838, %v839
    %v841 = vrot.slane %v840, 1
    %v842 = vadd.f32 %v840, %v841
    %v843 = vmul.f32 %v842, %v792
    %v844 = vadd.f32 %v843, 1e-05
    %v845 = vrsqrt.pop %v844
    %v846 = vmul.f32 %v845, %v22
    %v847 = vlaneseq
    %v848 = vshrl.u32 %v847, 7
    %v849 = vsub.s32 1, %v848
    %v850 = vrot.slane %v846, %v849
    %v851 = vmul.f32 %v834, %v850
    %v852 = vadd.f32 %v851, %v814
    %853 = vst.msk [vmem:[#allocation2 + $0x8] sm:$0xff] %vm816, %v852
    %v854 = vsub.f32 %v823, %v822
    %v855 = vmul.f32 %v854, 0.1
    %v856 = vadd.f32 %v822, %v855
    %v857 = vmul.f32 %v823, 0.95
    %vm858 = vcmp.gt.f32.partialorder %v856, 1.0
    %v859 = vsel %vm858, 0.0, %v856
    %v860 = vadd.f32 %v857, %v769
    %v861 = vsel %vm858, 1, 0
    %v862 = vcvt.s32.f32 %v861
    %v863 = vsel %vm816, %v862, 0.0
    %v864 = vrot.slane %v863, 4
    %v865 = vadd.f32 %v863, %v864
    %v866 = vrot.slane %v865, 2
    %v867 = vadd.f32 %v865, %v866
    %v868 = vrot.slane %v867, 1
    %v869 = vadd.f32 %v867, %v868
    %v870 = vmul.f32 %v869, %v792
    %v871 = vsub.f32 %v862, %v870
    %v872 = vmul.f32 %v871, %v871
    %v873 = vsel %vm816, %v872, 0.0
    %v874 = vrot.slane %v873, 4
    %v875 = vadd.f32 %v873, %v874
    %v876 = vrot.slane %v875, 2
    %v877 = vadd.f32 %v875, %v876
    %v878 = vrot.slane %v877, 1
    %v879 = vadd.f32 %v877, %v878
    %v880 = vmul.f32 %v879, %v792
    %v881 = vadd.f32 %v880, 1e-05
    %v882 = vrsqrt.pop %v881
    %v883 = vmul.f32 %v882, %v22
    %v884 = vlaneseq
    %v885 = vshrl.u32 %v884, 7
    %v886 = vsub.s32 1, %v885
    %v887 = vrot.slane %v883, %v886
    %v888 = vmul.f32 %v871, %v887
    %v889 = vadd.f32 %v888, %v814
    %890 = vst.msk [vmem:[#allocation2 + $0x10] sm:$0xff] %vm816, %v889
    %v891 = vsub.f32 %v860, %v859
    %v892 = vmul.f32 %v891, 0.1
    %v893 = vadd.f32 %v859, %v892
    %v894 = vmul.f32 %v860, 0.95
    %vm895 = vcmp.gt.f32.partialorder %v893, 1.0
    %v896 = vsel %vm895, 0.0, %v893
    %v897 = vadd.f32 %v894, %v772
    %v898 = vsel %vm895, 1, 0
    %v899 = vcvt.s32.f32 %v898
    %v900 = vsel %vm816, %v899, 0.0
    %v901 = vrot.slane %v900, 4
    %v902 = vadd.f32 %v900, %v901
    %v903 = vrot.slane %v902, 2
    %v904 = vadd.f32 %v902, %v903
    %v905 = vrot.slane %v904, 1
    %v906 = vadd.f32 %v904, %v905
    %v907 = vmul.f32 %v906, %v792
    %v908 = vsub.f32 %v899, %v907
    %v909 = vmul.f32 %v908, %v908
    %v910 = vsel %vm816, %v909, 0.0
    %v911 = vrot.slane %v910, 4
    %v912 = vadd.f32 %v910, %v911
    %v913 = vrot.slane %v912, 2
    %v914 = vadd.f32 %v912, %v913
    %v915 = vrot.slane %v914, 1
    %v916 = vadd.f32 %v914, %v915
    %v917 = vmul.f32 %v916, %v792
    %v918 = vadd.f32 %v917, 1e-05
    %v919 = vrsqrt.pop %v918
    %v920 = vmul.f32 %v919, %v22
    %v921 = vlaneseq
    %v922 = vshrl.u32 %v921, 7
    %v923 = vsub.s32 1, %v922
    %v924 = vrot.slane %v920, %v923
    %v925 = vmul.f32 %v908, %v924
    %v926 = vadd.f32 %v925, %v814
    %927 = vst.msk [vmem:[#allocation2 + $0x18] sm:$0xff] %vm816, %v926
    %v928 = vsub.f32 %v897, %v896
    %v929 = vmul.f32 %v928, 0.1
    %v930 = vadd.f32 %v896, %v929
    %v931 = vmul.f32 %v897, 0.95
    %vm932 = vcmp.gt.f32.partialorder %v930, 1.0
    %v933 = vsel %vm932, 0.0, %v930
    %v934 = vadd.f32 %v931, %v777
    %v935 = vsel %vm932, 1, 0
    %v936 = vcvt.s32.f32 %v935
    %v937 = vsel %vm816, %v936, 0.0
    %v938 = vrot.slane %v937, 4
    %v939 = vadd.f32 %v937, %v938
    %v940 = vrot.slane %v939, 2
    %v941 = vadd.f32 %v939, %v940
    %v942 = vrot.slane %v941, 1
    %v943 = vadd.f32 %v941, %v942
    %v944 = vmul.f32 %v943, %v792
    %v945 = vsub.f32 %v936, %v944
    %v946 = vmul.f32 %v945, %v945
    %v947 = vsel %vm816, %v946, 0.0
    %v948 = vrot.slane %v947, 4
    %v949 = vadd.f32 %v947, %v948
    %v950 = vrot.slane %v949, 2
    %v951 = vadd.f32 %v949, %v950
    %v952 = vrot.slane %v951, 1
    %v953 = vadd.f32 %v951, %v952
    %v954 = vmul.f32 %v953, %v792
    %v955 = vadd.f32 %v954, 1e-05
    %v956 = vrsqrt.pop %v955
    %v957 = vmul.f32 %v956, %v22
    %v958 = vlaneseq
    %v959 = vshrl.u32 %v958, 7
    %v960 = vsub.s32 1, %v959
    %v961 = vrot.slane %v957, %v960
    %v962 = vmul.f32 %v945, %v961
    %v963 = vadd.f32 %v962, %v814
    %964 = vst.msk [vmem:[#allocation2 + $0x20] sm:$0xff] %vm816, %v963
    %v965 = vsub.f32 %v934, %v933
    %v966 = vmul.f32 %v965, 0.1
    %v967 = vadd.f32 %v933, %v966
    %vm968 = vcmp.gt.f32.partialorder %v967, 1.0
    %v969 = vsel %vm968, 1, 0
    %v970 = vcvt.s32.f32 %v969
    %v971 = vsel %vm816, %v970, 0.0
    %v972 = vrot.slane %v971, 4
    %v973 = vadd.f32 %v971, %v972
    %v974 = vrot.slane %v973, 2
    %v975 = vadd.f32 %v973, %v974
    %v976 = vrot.slane %v975, 1
    %v977 = vadd.f32 %v975, %v976
    %v978 = vmul.f32 %v977, %v792
    %v979 = vsub.f32 %v970, %v978
    %v980 = vmul.f32 %v979, %v979
    %v981 = vsel %vm816, %v980, 0.0
    %v982 = vrot.slane %v981, 4
    %v983 = vadd.f32 %v981, %v982
    %v984 = vrot.slane %v983, 2
    %v985 = vadd.f32 %v983, %v984
    %v986 = vrot.slane %v985, 1
    %v987 = vadd.f32 %v985, %v986
    %v988 = vmul.f32 %v987, %v792
    %v989 = vadd.f32 %v988, 1e-05
    %v990 = vrsqrt.pop %v989
    %v991 = vmul.f32 %v990, %v22
    %v992 = vlaneseq
    %v993 = vshrl.u32 %v992, 7
    %v994 = vsub.s32 1, %v993
    %v995 = vrot.slane %v991, %v994
    %v996 = vmul.f32 %v979, %v995
    %v997 = vadd.f32 %v996, %v814
    %998 = vst.msk [vmem:[#allocation2 + $0x28] sm:$0xff] %vm816, %v997
    %v999 = vld [vmem:[#allocation2] sm:$0xff]
    %v1000 = vld [vmem:[#allocation2 + $0x8] sm:$0xff]
    %v1001 = vld [vmem:[#allocation2 + $0x10] sm:$0xff]
    %v1002 = vld [vmem:[#allocation2 + $0x18] sm:$0xff]
    %v1003 = vld [vmem:[#allocation2 + $0x20] sm:$0xff]
    %v1004 = vld [vmem:[#allocation2 + $0x28] sm:$0xff]
    %v1005 = vpack.c.bf16 %v1000, %v999
    %v1006 = vpack.c.bf16 %v1002, %v1001
    %v1007 = vpack.c.bf16 %v1004, %v1003
    %v1008 = vld [vmem:[%s2] sm:$0xf]
    %v1009 = vld [vmem:[%s2 + $0x4] sm:$0xf]
    %v1010 = vld [vmem:[%s2 + $0x8] sm:$0xf]
    %v1011 = vld [vmem:[%s2 + $0xc] sm:$0xf]
    %v1012 = vld [vmem:[%s2 + $0x10] sm:$0xf]
    %v1013 = vld [vmem:[%s2 + $0x14] sm:$0xf]
    %v1014 = vld [vmem:[%s2 + $0x18] sm:$0xf]
    %v1015 = vld [vmem:[%s2 + $0x1c] sm:$0xf]
    %v1016 = vlaneseq
    %v1017 = vshrl.u32 %v1016, 7
    %v1018 = vsub.s32 3, %v1017
    %v1019 = vrot.slane %v22, %v1018
    %v1028 = vunpack.c.l.b16 %v1008
    %v1029 = vunpack.c.l.b16 %v1009
    %v1030 = vunpack.c.l.b16 %v1010
    %v1031 = vunpack.c.l.b16 %v1011
    %v1032 = vunpack.c.l.b16 %v1012
    %v1033 = vunpack.c.l.b16 %v1013
    %v1034 = vunpack.c.l.b16 %v1014
    %v1035 = vunpack.c.l.b16 %v1015
    %v1036 = vpack.c.b16 %v1029, %v1028
    %v1037 = vpack.c.b16 %v1031, %v1030
    %v1038 = vpack.c.b16 %v1033, %v1032
    %v1039 = vpack.c.b16 %v1035, %v1034
    %v1045 = vsel %vm816, %v1005, 0
    %v1048 = vsel %vm816, %v1006, 0
    %v1051 = vsel %vm816, %v1007, 0
    %1053 = vmatprep.subr.bf16.mxu0 0
    %1054 = vmatpush1.bf16.msra.mxu0 0
    %1055 = vmatprep.subr.bf16.mxu0 0
    %1056 = vmatpush1.bf16.msra.mxu0 0
    %1057 = vmatprep.subr.bf16.mxu0 0
    %1058 = vmatpush1.bf16.msra.mxu0 0
    %1059 = vmatprep.subr.bf16.mxu0 0
    %1060 = vmatpush1.bf16.msra.mxu0 0
    %1061 = vmatprep.subr.bf16.mxu0 0
    %1062 = vmatpush1.bf16.msra.mxu0 %v1039
    %1063 = vmatprep.subr.bf16.mxu0 0
    %1064 = vmatpush1.bf16.msra.mxu0 %v1038
    %1065 = vmatprep.subr.bf16.mxu0 0
    %1066 = vmatpush1.bf16.msra.mxu0 %v1037
    %1067 = vmatprep.subr.bf16.mxu0 0
    %1068 = vmatpush1.bf16.msra.mxu0 %v1036
    %1069 = vmatprep.subr.bf16.mxu0 0
    %1070 = vmatpush2.bf16.msra.mxu0 0
    %1071 = vmatprep.subr.bf16.mxu0 0
    %1072 = vmatpush2.bf16.msra.mxu0 0
    %1073 = vmatprep.subr.bf16.mxu0 0
    %1074 = vmatpush2.bf16.msra.mxu0 0
    %1075 = vmatprep.subr.bf16.mxu0 0
    %1076 = vmatpush2.bf16.msra.mxu0 0
    %1077 = vmatprep.subr.bf16.mxu0 0
    %1078 = vmatpush2.bf16.msra.mxu0 0
    %1079 = vmatprep.subr.bf16.mxu0 0
    %1080 = vmatpush2.bf16.msra.mxu0 0
    %1081 = vmatprep.subr.bf16.mxu0 0
    %1082 = vmatpush2.bf16.msra.mxu0 0
    %1083 = vmatprep.subr.bf16.mxu0 0
    %1084 = vmatpush2.bf16.msra.mxu0 0
    %1085 = vmatprep.mubr.bf16.mxu0 0
    %1086 = vmatmul.mubr.bf16.gmra.mxu0 %v1045
    %v1087 = vpop.f32.mrf.mxu0
    %v1088 = vadd.f32 %v1019, %v1087
    %v1089 = vpop.f32.mrf.mxu0
    %v1090 = vpop.f32.mrf.mxu0
    %v1091 = vadd.f32 %v1019, %v1090
    %v1092 = vpop.f32.mrf.mxu0
    %1093 = vmatprep.mubr.bf16.mxu0 0
    %1094 = vmatmul.mubr.bf16.gmra.mxu0 %v1048
    %v1095 = vpop.f32.mrf.mxu0
    %v1096 = vadd.f32 %v1019, %v1095
    %v1097 = vpop.f32.mrf.mxu0
    %v1098 = vpop.f32.mrf.mxu0
    %v1099 = vadd.f32 %v1019, %v1098
    %v1100 = vpop.f32.mrf.mxu0
    %1101 = vmatprep.mubr.bf16.mxu0 0
    %1102 = vmatmul.mubr.bf16.gmra.mxu0 %v1051
    %v1103 = vpop.f32.mrf.mxu0
    %v1104 = vadd.f32 %v1019, %v1103
    %v1105 = vpop.f32.mrf.mxu0
    %v1106 = vpop.f32.mrf.mxu0
    %v1107 = vpop.f32.mrf.mxu0
    %1108 = vdwg.mxu0
    %v1109 = vadd.f32 %v1088, 0.0
    %v1110 = vlaneseq
    %v1111 = vshrl.u32 %v1110, 7
    %v1112 = vsub.s32 4, %v1111
    %v1113 = vrot.slane %v805, %v1112
    %v1114 = vmul.f32 %v794, %v1113
    %v1115 = vlaneseq
    %v1116 = vshrl.u32 %v1115, 7
    %v1117 = vsub.s32 5, %v1116
    %v1118 = vrot.slane %v22, %v1117
    %v1119 = vadd.f32 %v1114, %v1118
    %1120 = vst.msk [vmem:[#allocation3] sm:$0xff] %vm816, %v1119
    %v1121 = vmul.f32 %v1109, 0.1
    %v1122 = vadd.f32 %v1121, 0.0
    %v1123 = vmul.f32 %v1109, 0.95
    %vm1124 = vcmp.gt.f32.partialorder %v1122, 1.0
    %v1125 = vsel %vm1124, 0.0, %v1122
    %v1126 = vadd.f32 %v1123, %v1091
    %v1127 = vsel %vm1124, 1, 0
    %v1128 = vcvt.s32.f32 %v1127
    %v1129 = vsel %vm816, %v1128, 0.0
    %v1130 = vrot.slane %v1129, 4
    %v1131 = vadd.f32 %v1129, %v1130
    %v1132 = vrot.slane %v1131, 2
    %v1133 = vadd.f32 %v1131, %v1132
    %v1134 = vrot.slane %v1133, 1
    %v1135 = vadd.f32 %v1133, %v1134
    %v1136 = vmul.f32 %v1135, %v792
    %v1137 = vsub.f32 %v1128, %v1136
    %v1138 = vmul.f32 %v1137, %v1137
    %v1139 = vsel %vm816, %v1138, 0.0
    %v1140 = vrot.slane %v1139, 4
    %v1141 = vadd.f32 %v1139, %v1140
    %v1142 = vrot.slane %v1141, 2
    %v1143 = vadd.f32 %v1141, %v1142
    %v1144 = vrot.slane %v1143, 1
    %v1145 = vadd.f32 %v1143, %v1144
    %v1146 = vmul.f32 %v1145, %v792
    %v1147 = vadd.f32 %v1146, 1e-05
    %v1148 = vrsqrt.pop %v1147
    %v1149 = vmul.f32 %v1148, %v22
    %v1150 = vlaneseq
    %v1151 = vshrl.u32 %v1150, 7
    %v1152 = vsub.s32 4, %v1151
    %v1153 = vrot.slane %v1149, %v1152
    %v1154 = vmul.f32 %v1137, %v1153
    %v1155 = vadd.f32 %v1154, %v1118
    %1156 = vst.msk [vmem:[#allocation3 + $0x8] sm:$0xff] %vm816, %v1155
    %v1157 = vsub.f32 %v1126, %v1125
    %v1158 = vmul.f32 %v1157, 0.1
    %v1159 = vadd.f32 %v1125, %v1158
    %v1160 = vmul.f32 %v1126, 0.95
    %vm1161 = vcmp.gt.f32.partialorder %v1159, 1.0
    %v1162 = vsel %vm1161, 0.0, %v1159
    %v1163 = vadd.f32 %v1160, %v1096
    %v1164 = vsel %vm1161, 1, 0
    %v1165 = vcvt.s32.f32 %v1164
    %v1166 = vsel %vm816, %v1165, 0.0
    %v1167 = vrot.slane %v1166, 4
    %v1168 = vadd.f32 %v1166, %v1167
    %v1169 = vrot.slane %v1168, 2
    %v1170 = vadd.f32 %v1168, %v1169
    %v1171 = vrot.slane %v1170, 1
    %v1172 = vadd.f32 %v1170, %v1171
    %v1173 = vmul.f32 %v1172, %v792
    %v1174 = vsub.f32 %v1165, %v1173
    %v1175 = vmul.f32 %v1174, %v1174
    %v1176 = vsel %vm816, %v1175, 0.0
    %v1177 = vrot.slane %v1176, 4
    %v1178 = vadd.f32 %v1176, %v1177
    %v1179 = vrot.slane %v1178, 2
    %v1180 = vadd.f32 %v1178, %v1179
    %v1181 = vrot.slane %v1180, 1
    %v1182 = vadd.f32 %v1180, %v1181
    %v1183 = vmul.f32 %v1182, %v792
    %v1184 = vadd.f32 %v1183, 1e-05
    %v1185 = vrsqrt.pop %v1184
    %v1186 = vmul.f32 %v1185, %v22
    %v1187 = vlaneseq
    %v1188 = vshrl.u32 %v1187, 7
    %v1189 = vsub.s32 4, %v1188
    %v1190 = vrot.slane %v1186, %v1189
    %v1191 = vmul.f32 %v1174, %v1190
    %v1192 = vadd.f32 %v1191, %v1118
    %1193 = vst.msk [vmem:[#allocation3 + $0x10] sm:$0xff] %vm816, %v1192
    %v1194 = vsub.f32 %v1163, %v1162
    %v1195 = vmul.f32 %v1194, 0.1
    %v1196 = vadd.f32 %v1162, %v1195
    %v1197 = vmul.f32 %v1163, 0.95
    %vm1198 = vcmp.gt.f32.partialorder %v1196, 1.0
    %v1199 = vsel %vm1198, 0.0, %v1196
    %v1200 = vadd.f32 %v1197, %v1099
    %v1201 = vsel %vm1198, 1, 0
    %v1202 = vcvt.s32.f32 %v1201
    %v1203 = vsel %vm816, %v1202, 0.0
    %v1204 = vrot.slane %v1203, 4
    %v1205 = vadd.f32 %v1203, %v1204
    %v1206 = vrot.slane %v1205, 2
    %v1207 = vadd.f32 %v1205, %v1206
    %v1208 = vrot.slane %v1207, 1
    %v1209 = vadd.f32 %v1207, %v1208
    %v1210 = vmul.f32 %v1209, %v792
    %v1211 = vsub.f32 %v1202, %v1210
    %v1212 = vmul.f32 %v1211, %v1211
    %v1213 = vsel %vm816, %v1212, 0.0
    %v1214 = vrot.slane %v1213, 4
    %v1215 = vadd.f32 %v1213, %v1214
    %v1216 = vrot.slane %v1215, 2
    %v1217 = vadd.f32 %v1215, %v1216
    %v1218 = vrot.slane %v1217, 1
    %v1219 = vadd.f32 %v1217, %v1218
    %v1220 = vmul.f32 %v1219, %v792
    %v1221 = vadd.f32 %v1220, 1e-05
    %v1222 = vrsqrt.pop %v1221
    %v1223 = vmul.f32 %v1222, %v22
    %v1224 = vlaneseq
    %v1225 = vshrl.u32 %v1224, 7
    %v1226 = vsub.s32 4, %v1225
    %v1227 = vrot.slane %v1223, %v1226
    %v1228 = vmul.f32 %v1211, %v1227
    %v1229 = vadd.f32 %v1228, %v1118
    %1230 = vst.msk [vmem:[#allocation3 + $0x18] sm:$0xff] %vm816, %v1229
    %v1231 = vsub.f32 %v1200, %v1199
    %v1232 = vmul.f32 %v1231, 0.1
    %v1233 = vadd.f32 %v1199, %v1232
    %v1234 = vmul.f32 %v1200, 0.95
    %vm1235 = vcmp.gt.f32.partialorder %v1233, 1.0
    %v1236 = vsel %vm1235, 0.0, %v1233
    %v1237 = vadd.f32 %v1234, %v1104
    %v1238 = vsel %vm1235, 1, 0
    %v1239 = vcvt.s32.f32 %v1238
    %v1240 = vsel %vm816, %v1239, 0.0
    %v1241 = vrot.slane %v1240, 4
    %v1242 = vadd.f32 %v1240, %v1241
    %v1243 = vrot.slane %v1242, 2
    %v1244 = vadd.f32 %v1242, %v1243
    %v1245 = vrot.slane %v1244, 1
    %v1246 = vadd.f32 %v1244, %v1245
    %v1247 = vmul.f32 %v1246, %v792
    %v1248 = vsub.f32 %v1239, %v1247
    %v1249 = vmul.f32 %v1248, %v1248
    %v1250 = vsel %vm816, %v1249, 0.0
    %v1251 = vrot.slane %v1250, 4
    %v1252 = vadd.f32 %v1250, %v1251
    %v1253 = vrot.slane %v1252, 2
    %v1254 = vadd.f32 %v1252, %v1253
    %v1255 = vrot.slane %v1254, 1
    %v1256 = vadd.f32 %v1254, %v1255
    %v1257 = vmul.f32 %v1256, %v792
    %v1258 = vadd.f32 %v1257, 1e-05
    %v1259 = vrsqrt.pop %v1258
    %v1260 = vmul.f32 %v1259, %v22
    %v1261 = vlaneseq
    %v1262 = vshrl.u32 %v1261, 7
    %v1263 = vsub.s32 4, %v1262
    %v1264 = vrot.slane %v1260, %v1263
    %v1265 = vmul.f32 %v1248, %v1264
    %v1266 = vadd.f32 %v1265, %v1118
    %1267 = vst.msk [vmem:[#allocation3 + $0x20] sm:$0xff] %vm816, %v1266
    %v1268 = vsub.f32 %v1237, %v1236
    %v1269 = vmul.f32 %v1268, 0.1
    %v1270 = vadd.f32 %v1236, %v1269
    %vm1271 = vcmp.gt.f32.partialorder %v1270, 1.0
    %v1272 = vsel %vm1271, 1, 0
    %v1273 = vcvt.s32.f32 %v1272
    %v1274 = vsel %vm816, %v1273, 0.0
    %v1275 = vrot.slane %v1274, 4
    %v1276 = vadd.f32 %v1274, %v1275
    %v1277 = vrot.slane %v1276, 2
    %v1278 = vadd.f32 %v1276, %v1277
    %v1279 = vrot.slane %v1278, 1
    %v1280 = vadd.f32 %v1278, %v1279
    %v1281 = vmul.f32 %v1280, %v792
    %v1282 = vsub.f32 %v1273, %v1281
    %v1283 = vmul.f32 %v1282, %v1282
    %v1284 = vsel %vm816, %v1283, 0.0
    %v1285 = vrot.slane %v1284, 4
    %v1286 = vadd.f32 %v1284, %v1285
    %v1287 = vrot.slane %v1286, 2
    %v1288 = vadd.f32 %v1286, %v1287
    %v1289 = vrot.slane %v1288, 1
    %v1290 = vadd.f32 %v1288, %v1289
    %v1291 = vmul.f32 %v1290, %v792
    %v1292 = vadd.f32 %v1291, 1e-05
    %v1293 = vrsqrt.pop %v1292
    %v1294 = vmul.f32 %v1293, %v22
    %v1295 = vlaneseq
    %v1296 = vshrl.u32 %v1295, 7
    %v1297 = vsub.s32 4, %v1296
    %v1298 = vrot.slane %v1294, %v1297
    %v1299 = vmul.f32 %v1282, %v1298
    %v1300 = vadd.f32 %v1299, %v1118
    %1301 = vst.msk [vmem:[#allocation3 + $0x28] sm:$0xff] %vm816, %v1300
    %v1302 = vld [vmem:[#allocation3] sm:$0xff]
    %v1303 = vld [vmem:[#allocation3 + $0x8] sm:$0xff]
    %v1304 = vld [vmem:[#allocation3 + $0x10] sm:$0xff]
    %v1305 = vld [vmem:[#allocation3 + $0x18] sm:$0xff]
    %v1306 = vld [vmem:[#allocation3 + $0x20] sm:$0xff]
    %v1307 = vld [vmem:[#allocation3 + $0x28] sm:$0xff]
    %v1308 = vpack.c.bf16 %v1303, %v1302
    %v1309 = vpack.c.bf16 %v1305, %v1304
    %v1310 = vpack.c.bf16 %v1307, %v1306
    %v1311 = vld [vmem:[%s3] sm:$0xf]
    %v1312 = vld [vmem:[%s3 + $0x4] sm:$0xf]
    %v1313 = vld [vmem:[%s3 + $0x8] sm:$0xf]
    %v1314 = vld [vmem:[%s3 + $0xc] sm:$0xf]
    %v1315 = vld [vmem:[%s3 + $0x10] sm:$0xf]
    %v1316 = vld [vmem:[%s3 + $0x14] sm:$0xf]
    %v1317 = vld [vmem:[%s3 + $0x18] sm:$0xf]
    %v1318 = vld [vmem:[%s3 + $0x1c] sm:$0xf]
    %v1327 = vunpack.c.l.b16 %v1311
    %v1328 = vunpack.c.l.b16 %v1312
    %v1329 = vunpack.c.l.b16 %v1313
    %v1330 = vunpack.c.l.b16 %v1314
    %v1331 = vunpack.c.l.b16 %v1315
    %v1332 = vunpack.c.l.b16 %v1316
    %v1333 = vunpack.c.l.b16 %v1317
    %v1334 = vunpack.c.l.b16 %v1318
    %v1335 = vpack.c.b16 %v1328, %v1327
    %v1336 = vpack.c.b16 %v1330, %v1329
    %v1337 = vpack.c.b16 %v1332, %v1331
    %v1338 = vpack.c.b16 %v1334, %v1333
    %v1344 = vsel %vm816, %v1308, 0
    %v1347 = vsel %vm816, %v1309, 0
    %v1350 = vsel %vm816, %v1310, 0
    %1352 = vmatprep.subr.bf16.mxu0 0
    %1353 = vmatpush1.bf16.msra.mxu0 0
    %1354 = vmatprep.subr.bf16.mxu0 0
    %1355 = vmatpush1.bf16.msra.mxu0 0
    %1356 = vmatprep.subr.bf16.mxu0 0
    %1357 = vmatpush1.bf16.msra.mxu0 0
    %1358 = vmatprep.subr.bf16.mxu0 0
    %1359 = vmatpush1.bf16.msra.mxu0 0
    %1360 = vmatprep.subr.bf16.mxu0 0
    %1361 = vmatpush1.bf16.msra.mxu0 %v1338
    %1362 = vmatprep.subr.bf16.mxu0 0
    %1363 = vmatpush1.bf16.msra.mxu0 %v1337
    %1364 = vmatprep.subr.bf16.mxu0 0
    %1365 = vmatpush1.bf16.msra.mxu0 %v1336
    %1366 = vmatprep.subr.bf16.mxu0 0
    %1367 = vmatpush1.bf16.msra.mxu0 %v1335
    %1368 = vmatprep.subr.bf16.mxu0 0
    %1369 = vmatpush2.bf16.msra.mxu0 0
    %1370 = vmatprep.subr.bf16.mxu0 0
    %1371 = vmatpush2.bf16.msra.mxu0 0
    %1372 = vmatprep.subr.bf16.mxu0 0
    %1373 = vmatpush2.bf16.msra.mxu0 0
    %1374 = vmatprep.subr.bf16.mxu0 0
    %1375 = vmatpush2.bf16.msra.mxu0 0
    %1376 = vmatprep.subr.bf16.mxu0 0
    %1377 = vmatpush2.bf16.msra.mxu0 0
    %1378 = vmatprep.subr.bf16.mxu0 0
    %1379 = vmatpush2.bf16.msra.mxu0 0
    %1380 = vmatprep.subr.bf16.mxu0 0
    %1381 = vmatpush2.bf16.msra.mxu0 0
    %1382 = vmatprep.subr.bf16.mxu0 0
    %1383 = vmatpush2.bf16.msra.mxu0 0
    %1384 = vmatprep.mubr.bf16.mxu0 0
    %1385 = vmatmul.mubr.bf16.gmra.mxu0 %v1344
    %v1386 = vpop.f32.mrf.mxu0
    %v1387 = vadd.f32 0.0, %v1386
    %v1388 = vpop.f32.mrf.mxu0
    %v1389 = vpop.f32.mrf.mxu0
    %v1390 = vadd.f32 0.0, %v1389
    %v1391 = vpop.f32.mrf.mxu0
    %1392 = vmatprep.mubr.bf16.mxu0 0
    %1393 = vmatmul.mubr.bf16.gmra.mxu0 %v1347
    %v1394 = vpop.f32.mrf.mxu0
    %v1395 = vadd.f32 0.0, %v1394
    %v1396 = vpop.f32.mrf.mxu0
    %v1397 = vpop.f32.mrf.mxu0
    %v1398 = vadd.f32 0.0, %v1397
    %v1399 = vpop.f32.mrf.mxu0
    %1400 = vmatprep.mubr.bf16.mxu0 0
    %1401 = vmatmul.mubr.bf16.gmra.mxu0 %v1350
    %v1402 = vpop.f32.mrf.mxu0
    %v1403 = vadd.f32 0.0, %v1402
    %v1404 = vpop.f32.mrf.mxu0
    %v1405 = vpop.f32.mrf.mxu0
    %v1406 = vadd.f32 0.0, %v1405
    %v1407 = vpop.f32.mrf.mxu0
    %1408 = vdwg.mxu0
    %v1409 = vadd.f32 %v1387, 0.0
    %v1410 = vmul.f32 %v1409, 0.1
    %v1411 = vadd.f32 %v1410, 0.0
    %v1412 = vmul.f32 %v1409, 0.8
    %1413 = vst [vmem:[#allocation4] sm:$0xff] %v1411
    %v1414 = vadd.f32 %v1412, %v1390
    %v1415 = vsub.f32 %v1414, %v1411
    %v1416 = vmul.f32 %v1415, 0.1
    %v1417 = vadd.f32 %v1411, %v1416
    %v1418 = vmul.f32 %v1414, 0.8
    %s1419 = scalar_lea.vmem [#allocation4], 8
    %1420 = vst [vmem:[%s1419] sm:$0xff] %v1417
    %v1421 = vadd.f32 %v1418, %v1395
    %v1422 = vsub.f32 %v1421, %v1417
    %v1423 = vmul.f32 %v1422, 0.1
    %v1424 = vadd.f32 %v1417, %v1423
    %v1425 = vmul.f32 %v1421, 0.8
    %s1426 = scalar_lea.vmem [#allocation4], 16
    %1427 = vst [vmem:[%s1426] sm:$0xff] %v1424
    %v1428 = vadd.f32 %v1425, %v1398
    %v1429 = vsub.f32 %v1428, %v1424
    %v1430 = vmul.f32 %v1429, 0.1
    %v1431 = vadd.f32 %v1424, %v1430
    %v1432 = vmul.f32 %v1428, 0.8
    %s1433 = scalar_lea.vmem [#allocation4], 24
    %1434 = vst [vmem:[%s1433] sm:$0xff] %v1431
    %v1435 = vadd.f32 %v1432, %v1403
    %v1436 = vsub.f32 %v1435, %v1431
    %v1437 = vmul.f32 %v1436, 0.1
    %v1438 = vadd.f32 %v1431, %v1437
    %v1439 = vmul.f32 %v1435, 0.8
    %s1440 = scalar_lea.vmem [#allocation4], 32
    %1441 = vst [vmem:[%s1440] sm:$0xff] %v1438
    %v1442 = vadd.f32 %v1439, %v1406
    %v1443 = vsub.f32 %v1442, %v1438
    %v1444 = vmul.f32 %v1443, 0.1
    %v1445 = vadd.f32 %v1438, %v1444
    %s1446 = scalar_lea.vmem [#allocation4], 40
    %1447 = vst [vmem:[%s1446] sm:$0xff] %v1445
    // Predicated region
    $region22: #{seqnet_forward.1} parent=1 // pred_check
      _
    $region23: #{seqnet_forward.1} parent=1 // pred_check_branch
      %1449 = sbr.rel (0) target = $region25
    $region24: #{seqnet_forward.1} parent=1 // pred_region
      %s1451 = ssub.s32 768, 768
      %1452 = vsyncadd [#allocation5], %s1451
      %s1453 = sshll.u32 [#allocation4], 4
      %s1454 = int_to_ptr.vmem [resolvable:$true] %s1453
      %1459 = dma.vmem_to_hbm [thread:$0]  %s1454, 768, %s5, [#allocation5], 128, 128, 8
    $region25: #{seqnet_forward.1} parent=1 // pred_fallthru
      _
    // Predicated region
    $region26: #{seqnet_forward.1} parent=1 // pred_check
      _
    $region27: #{seqnet_forward.1} parent=1 // pred_check_branch
      %1461 = sbr.rel (0) target = $region29
    $region28: #{seqnet_forward.1} parent=1 // pred_region
      %1462 = dma.done [#allocation5], 768
    $region29: #{seqnet_forward.1} parent=1 // pred_fallthru
      _
    %1463 = vsyncpa [#allocation5], 1

</llo_original>
